<compile_context>
chip_gen: v6e
topology: v6e:2x2x1
jax: 0.10.0
libtpu: 0.0.40
codegen_flags: <defaults>
</compile_context>

<pallas_src>
import functools
import math

import jax
import jax.numpy as jnp
import numpy as np
from jax import lax
from jax.experimental import pallas as pl
from jax.experimental.pallas import tpu as pltpu


def _layernorm(h, g, b, eps=1e-5):
    mu = jnp.mean(h, axis=-1, keepdims=True)
    var = jnp.mean((h - mu) ** 2, axis=-1, keepdims=True)
    return (h - mu) * lax.rsqrt(var + eps) * g + b


def block_kernel(x_ref,
                 ln1_g, ln1_b, wq_ref, bq_ref, wk_ref, bk_ref, wv_ref, bv_ref,
                 wproj_ref, bproj_ref,
                 ln2_g, ln2_b, wfc_ref, bfc_ref, wmp_ref, bmp_ref,
                 o_ref, *, n_head, kv_chunk):
    bf16 = jnp.bfloat16
    f32 = jnp.float32

    x = x_ref[...].astype(f32)                           # (Bt, T, C)
    Bt, T, C = x.shape
    H = n_head
    hd = C // H
    M = Bt * T                                           # batch folded into MXU M dim
    G = H * Bt

    xf = x.reshape(M, C)

    # ---- causal ReLU self-attention ----
    h = _layernorm(xf, ln1_g[...], ln1_b[...])           # f32 elementwise
    hb = h.astype(bf16)                                  # bf16 only at MXU inputs

    # Three lane-aligned (M, C) @ (C, C) dots; weights pre-split outside the kernel,
    # attention scale pre-folded into wq/bq.
    q = jnp.maximum(jnp.dot(hb, wq_ref[...], preferred_element_type=f32) + bq_ref[...], 0.0)
    k = jnp.maximum(jnp.dot(hb, wk_ref[...], preferred_element_type=f32) + bk_ref[...], 0.0)
    v = jnp.maximum(jnp.dot(hb, wv_ref[...], preferred_element_type=f32) + bv_ref[...], 0.0)

    # Head-major layout: one explicit relayout per tensor; afterwards every
    # per-(head, batch) matmul consumes a contiguous (T, hd) tile.
    def to_head_major(t):                                # (M, C) -> (G, T, hd)
        return t.astype(bf16).reshape(M, H, hd).transpose(1, 0, 2).reshape(G, T, hd)

    qg, kg, vg = to_head_major(q), to_head_major(k), to_head_major(v)

    row = lax.broadcasted_iota(jnp.int32, (T, T), 0)
    col = lax.broadcasted_iota(jnp.int32, (T, T), 1)
    causal = col <= row                                  # (T, T)

    # masked_fill(-inf) followed by relu  ==  relu(att) * causal_mask, and without a
    # softmax the KV chunks simply accumulate -> live score block is (G, T, kv_chunk).
    y_acc = None
    for j0 in range(0, T, kv_chunk):
        j1 = min(T, j0 + kv_chunk)
        att = jnp.einsum('gqd,gkd->gqk', qg, kg[:, j0:j1, :],
                         preferred_element_type=f32)     # (G, T, j1-j0)
        att = jnp.where(causal[None, :, j0:j1], jnp.maximum(att, 0.0), 0.0)
        # attn dropout = identity
        part = jnp.einsum('gqk,gkd->gqd', att.astype(bf16), vg[:, j0:j1, :],
                          preferred_element_type=f32)    # (G, T, hd)
        y_acc = part if y_acc is None else y_acc + part

    y = y_acc.reshape(H, M, hd).transpose(1, 0, 2).reshape(M, C)
    y = jnp.dot(y.astype(bf16), wproj_ref[...], preferred_element_type=f32) + bproj_ref[...]
    xf = xf + y                                          # resid dropout = identity

    # ---- MLP: c_fc -> relu -> c_proj ----
    h2 = _layernorm(xf, ln2_g[...], ln2_b[...])
    hf = jnp.maximum(
        jnp.dot(h2.astype(bf16), wfc_ref[...], preferred_element_type=f32) + bfc_ref[...], 0.0)
    hf = jnp.dot(hf.astype(bf16), wmp_ref[...], preferred_element_type=f32) + bmp_ref[...]
    xf = xf + hf                                         # resid dropout = identity

    o_ref[...] = xf.reshape(Bt, T, C).astype(o_ref.dtype)


def _pick_batch_tile(B, T, target_m=256):
    """Largest divisor of B such that Bt*T stays near the MXU M target, while keeping
    at least two parallel grid steps when T alone already fills the MXU."""
    cap = max(1, target_m // max(T, 1))
    if T >= 128 and B >= 2:
        cap = max(1, min(cap, B // 2))
    bt = 1
    for d in range(1, B + 1):
        if B % d == 0 and d <= cap:
            bt = d
    return bt


def block_forward(x, params, *, n_head, out_dtype=None, kv_chunk=512):
    B, T, C = x.shape
    assert C % n_head == 0
    bf16 = jnp.bfloat16
    f32 = jnp.float32
    out_dtype = x.dtype if out_dtype is None else out_dtype

    hd = C // n_head
    scale = 1.0 / math.sqrt(hd)

    # Split the fused c_attn weight into three lane-aligned (C, C) dots and fold the
    # 1/sqrt(hd) attention scale into wq/bq (commutes with ReLU since scale > 0).
    w_attn = params['attn_w']                            # (C, 3C)
    b_attn = params['attn_b']                            # (1, 3C)
    wq = (w_attn[:, 0:C] * scale).astype(bf16)
    wk = w_attn[:, C:2 * C].astype(bf16)
    wv = w_attn[:, 2 * C:3 * C].astype(bf16)
    bq = (b_attn[:, 0:C] * scale).astype(f32)
    bk = b_attn[:, C:2 * C].astype(f32)
    bv = b_attn[:, 2 * C:3 * C].astype(f32)

    inputs = (
        x,
        params['ln1_g'], params['ln1_b'],
        wq, bq, wk, bk, wv, bv,
        params['proj_w'].astype(bf16), params['proj_b'],
        params['ln2_g'], params['ln2_b'],
        params['fc_w'].astype(bf16), params['fc_b'],
        params['mproj_w'].astype(bf16), params['mproj_b'],
    )

    Bt = _pick_batch_tile(B, T)
    grid = (B // Bt,)
    kv_chunk = int(min(kv_chunk, T))
    M = Bt * T

    # Weights / biases: full-array blocks with a constant index_map -> stay resident
    # in VMEM across all grid steps (no re-DMA).
    # TODO(synk): at realistic sizes add pipeline_mode=pl.Buffered(1) here to
    #             single-buffer the resident weights (halves their VMEM footprint).
    def resident_spec(a):
        return pl.BlockSpec(a.shape, lambda b, _n=a.ndim: (0,) * _n)

    in_specs = [pl.BlockSpec((Bt, T, C), lambda b: (b, 0, 0))]
    in_specs += [resident_spec(a) for a in inputs[1:]]
    out_specs = pl.BlockSpec((Bt, T, C), lambda b: (b, 0, 0))

    # ---- generation-aware VMEM budget + cost estimate ----
    weight_bytes = sum(int(np.prod(a.shape)) * a.dtype.itemsize for a in inputs[1:])
    act_block_bytes = Bt * T * C * 4
    work_bytes = (12 * M * C * 4                          # f32 activations / residuals
                  + 3 * M * C * 2                         # bf16 head-major q/k/v
                  + n_head * Bt * T * kv_chunk * 4        # live attention score chunk
                  + 2 * M * (2 * C) * 4)                  # mlp hidden (f32)
    try:
        vmem_cap = int(pltpu.get_tpu_info().vmem_capacity_bytes)
    except Exception:
        vmem_cap = 64 * 1024 * 1024                       # v7x per-core (most restrictive)
    need = 2 * weight_bytes + 4 * act_block_bytes + work_bytes + (4 << 20)
    vmem_limit = int(min(int(0.85 * vmem_cap), max(32 << 20, need)))

    flops = B * (16 * T * C * C + 4 * T * T * C)          # qkv+proj+mlp + attention
    bytes_accessed = weight_bytes + 2 * B * T * C * 4     # weights + x read + out write
    cost = pl.CostEstimate(flops=flops, transcendentals=2 * B * T,
                           bytes_accessed=bytes_accessed)

    kernel = functools.partial(block_kernel, n_head=n_head, kv_chunk=kv_chunk)
    return pl.pallas_call(
        kernel,
        out_shape=jax.ShapeDtypeStruct((B, T, C), out_dtype),
        grid=grid,
        in_specs=in_specs,
        out_specs=out_specs,
        compiler_params=pltpu.CompilerParams(
            dimension_semantics=("parallel",),            # shards batch tiles across TCs
            vmem_limit_bytes=vmem_limit),
        cost_estimate=cost,
    )(*inputs)


def block_reference(x, params, *, n_head):
    """Pure-JAX f32 reference mirroring Block.forward (dropout = identity)."""
    B, T, C = x.shape
    hd = C // n_head

    def ln(h, g, b, eps=1e-5):
        mu = h.mean(-1, keepdims=True)
        var = ((h - mu) ** 2).mean(-1, keepdims=True)
        return (h - mu) / jnp.sqrt(var + eps) * g + b

    h = ln(x, params['ln1_g'], params['ln1_b'])
    qkv = h @ params['attn_w'] + params['attn_b']
    q, k, v = jnp.split(qkv, 3, axis=-1)
    q, k, v = (jax.nn.relu(t).reshape(B, T, n_head, hd).transpose(0, 2, 1, 3)
               for t in (q, k, v))
    att = jnp.einsum('bhqd,bhkd->bhqk', q, k) * (1.0 / math.sqrt(hd))
    causal = jnp.tril(jnp.ones((T, T), bool))
    att = jax.nn.relu(jnp.where(causal[None, None], att, -jnp.inf))
    y = jnp.einsum('bhqk,bhkd->bhqd', att, v).transpose(0, 2, 1, 3).reshape(B, T, C)
    x = x + (y @ params['proj_w'] + params['proj_b'])
    h2 = ln(x, params['ln2_g'], params['ln2_b'])
    x = x + (jax.nn.relu(h2 @ params['fc_w'] + params['fc_b'])
             @ params['mproj_w'] + params['mproj_b'])
    return x


def init_params(key, *, n_embd, n_layer=1):
    """Deterministic init mirroring GPT._init_weights (std=0.02, c_proj scaled)."""
    C = n_embd
    std = 0.02
    proj_std = 0.02 / math.sqrt(2 * n_layer)
    ks = jax.random.split(key, 4)
    p = dict(
        ln1_g=jnp.ones((1, C)), ln1_b=jnp.zeros((1, C)),
        attn_w=std * jax.random.normal(ks[0], (C, 3 * C)),
        attn_b=jnp.zeros((1, 3 * C)),
        proj_w=proj_std * jax.random.normal(ks[1], (C, C)),
        proj_b=jnp.zeros((1, C)),
        ln2_g=jnp.ones((1, C)), ln2_b=jnp.zeros((1, C)),
        fc_w=std * jax.random.normal(ks[2], (C, 2 * C)),
        fc_b=jnp.zeros((1, 2 * C)),
        mproj_w=proj_std * jax.random.normal(ks[3], (2 * C, C)),
        mproj_b=jnp.zeros((1, C)),
    )
    return {k: v.astype(jnp.float32) for k, v in p.items()}


if __name__ == "__main__":
    key = jax.random.PRNGKey(0)
    k_x, k_p, k_x2, k_p2 = jax.random.split(key, 4)

    # Small shapes consistent with the module: (batch, block_size, n_embd), n_head heads.
    B, T, C, N_HEAD = 2, 8, 32, 2
    x = jax.random.normal(k_x, (B, T, C), jnp.float32)
    params = init_params(k_p, n_embd=C)

    out = block_forward(x, params, n_head=N_HEAD)
    jax.block_until_ready(out)
    assert out.shape == (B, T, C)
    ref = block_reference(x, params, n_head=N_HEAD)
    np.testing.assert_allclose(np.asarray(out), np.asarray(ref), atol=2e-2, rtol=2e-2)

    # Second config: exercises batch-folding with >1 grid step and the KV-chunk loop.
    B2, T2, C2, H2 = 4, 128, 32, 4
    x2 = jax.random.normal(k_x2, (B2, T2, C2), jnp.float32)
    params2 = init_params(k_p2, n_embd=C2)
    out2 = block_forward(x2, params2, n_head=H2, kv_chunk=64)
    jax.block_until_ready(out2)
    assert out2.shape == (B2, T2, C2)
    ref2 = block_reference(x2, params2, n_head=H2)
    np.testing.assert_allclose(np.asarray(out2), np.asarray(ref2), atol=3e-2, rtol=3e-2)

    print("KERNEL_OK")
</pallas_src>

<mosaic_0001>
module attributes {stable_mosaic.version = 11 : i64} {
  func.func @block_kernel(%arg0: i32, %arg1: memref<2x8x32xf32, #tpu.memory_space<vmem>>, %arg2: memref<1x32xf32, #tpu.memory_space<vmem>>, %arg3: memref<1x32xf32, #tpu.memory_space<vmem>>, %arg4: memref<32x32xbf16, #tpu.memory_space<vmem>>, %arg5: memref<1x32xf32, #tpu.memory_space<vmem>>, %arg6: memref<32x32xbf16, #tpu.memory_space<vmem>>, %arg7: memref<1x32xf32, #tpu.memory_space<vmem>>, %arg8: memref<32x32xbf16, #tpu.memory_space<vmem>>, %arg9: memref<1x32xf32, #tpu.memory_space<vmem>>, %arg10: memref<32x32xbf16, #tpu.memory_space<vmem>>, %arg11: memref<1x32xf32, #tpu.memory_space<vmem>>, %arg12: memref<1x32xf32, #tpu.memory_space<vmem>>, %arg13: memref<1x32xf32, #tpu.memory_space<vmem>>, %arg14: memref<32x64xbf16, #tpu.memory_space<vmem>>, %arg15: memref<1x64xf32, #tpu.memory_space<vmem>>, %arg16: memref<64x32xbf16, #tpu.memory_space<vmem>>, %arg17: memref<1x32xf32, #tpu.memory_space<vmem>>, %arg18: memref<2x8x32xf32, #tpu.memory_space<vmem>>) attributes {dimension_semantics = [#tpu.dimension_semantics<parallel>], iteration_bounds = array<i64: 1>, scalar_prefetch = 0 : i64, scratch_operands = 0 : i64, tpu.core_type = #tpu.core_type<tc>, window_params = [{transform_indices = @transform_0, window_bounds = array<i64: 2, 8, 32>}, {pipeline_mode = #tpu.pipeline_mode<synchronous>, transform_indices = @transform_1, window_bounds = array<i64: 1, 32>}, {pipeline_mode = #tpu.pipeline_mode<synchronous>, transform_indices = @transform_2, window_bounds = array<i64: 1, 32>}, {pipeline_mode = #tpu.pipeline_mode<synchronous>, transform_indices = @transform_3, window_bounds = array<i64: 32, 32>}, {pipeline_mode = #tpu.pipeline_mode<synchronous>, transform_indices = @transform_4, window_bounds = array<i64: 1, 32>}, {pipeline_mode = #tpu.pipeline_mode<synchronous>, transform_indices = @transform_5, window_bounds = array<i64: 32, 32>}, {pipeline_mode = #tpu.pipeline_mode<synchronous>, transform_indices = @transform_6, window_bounds = array<i64: 1, 32>}, {pipeline_mode = #tpu.pipeline_mode<synchronous>, transform_indices = @transform_7, window_bounds = array<i64: 32, 32>}, {pipeline_mode = #tpu.pipeline_mode<synchronous>, transform_indices = @transform_8, window_bounds = array<i64: 1, 32>}, {pipeline_mode = #tpu.pipeline_mode<synchronous>, transform_indices = @transform_9, window_bounds = array<i64: 32, 32>}, {pipeline_mode = #tpu.pipeline_mode<synchronous>, transform_indices = @transform_10, window_bounds = array<i64: 1, 32>}, {pipeline_mode = #tpu.pipeline_mode<synchronous>, transform_indices = @transform_11, window_bounds = array<i64: 1, 32>}, {pipeline_mode = #tpu.pipeline_mode<synchronous>, transform_indices = @transform_12, window_bounds = array<i64: 1, 32>}, {pipeline_mode = #tpu.pipeline_mode<synchronous>, transform_indices = @transform_13, window_bounds = array<i64: 32, 64>}, {pipeline_mode = #tpu.pipeline_mode<synchronous>, transform_indices = @transform_14, window_bounds = array<i64: 1, 64>}, {pipeline_mode = #tpu.pipeline_mode<synchronous>, transform_indices = @transform_15, window_bounds = array<i64: 64, 32>}, {pipeline_mode = #tpu.pipeline_mode<synchronous>, transform_indices = @transform_16, window_bounds = array<i64: 1, 32>}, {transform_indices = @transform_17, window_bounds = array<i64: 2, 8, 32>}]} {
    %c0 = arith.constant 0 : index
    %c0_0 = arith.constant 0 : index
    %c0_1 = arith.constant 0 : index
    %0 = vector.load %arg1[%c0, %c0_0, %c0_1] : memref<2x8x32xf32, #tpu.memory_space<vmem>>, vector<2x8x32xf32>
    %1 = vector.shape_cast %0 : vector<2x8x32xf32> to vector<16x32xf32>
    %c0_2 = arith.constant 0 : index
    %c0_3 = arith.constant 0 : index
    %2 = vector.load %arg2[%c0_2, %c0_3] : memref<1x32xf32, #tpu.memory_space<vmem>>, vector<1x32xf32>
    %c0_4 = arith.constant 0 : index
    %c0_5 = arith.constant 0 : index
    %3 = vector.load %arg3[%c0_4, %c0_5] : memref<1x32xf32, #tpu.memory_space<vmem>>, vector<1x32xf32>
    %cst = arith.constant dense<0.000000e+00> : vector<16xf32>
    %4 = vector.multi_reduction <add>, %1, %cst [1] : vector<16x32xf32> to vector<16xf32>
    %5 = vector.shape_cast %4 : vector<16xf32> to vector<16x1xf32>
    %cst_6 = arith.constant 3.200000e+01 : f32
    %6 = vector.broadcast %cst_6 : f32 to vector<16x1xf32>
    %7 = arith.divf %5, %6 : vector<16x1xf32>
    %8 = vector.broadcast %7 : vector<16x1xf32> to vector<16x32xf32>
    %9 = arith.subf %1, %8 : vector<16x32xf32>
    %10 = arith.mulf %9, %9 : vector<16x32xf32>
    %cst_7 = arith.constant dense<0.000000e+00> : vector<16xf32>
    %11 = vector.multi_reduction <add>, %10, %cst_7 [1] : vector<16x32xf32> to vector<16xf32>
    %12 = vector.shape_cast %11 : vector<16xf32> to vector<16x1xf32>
    %cst_8 = arith.constant 3.200000e+01 : f32
    %13 = vector.broadcast %cst_8 : f32 to vector<16x1xf32>
    %14 = arith.divf %12, %13 : vector<16x1xf32>
    %15 = vector.broadcast %7 : vector<16x1xf32> to vector<16x32xf32>
    %16 = arith.subf %1, %15 : vector<16x32xf32>
    %cst_9 = arith.constant 9.99999974E-6 : f32
    %17 = vector.broadcast %cst_9 : f32 to vector<16x1xf32>
    %18 = arith.addf %14, %17 : vector<16x1xf32>
    %19 = math.rsqrt %18 : vector<16x1xf32>
    %20 = vector.broadcast %19 : vector<16x1xf32> to vector<16x32xf32>
    %21 = arith.mulf %16, %20 : vector<16x32xf32>
    %22 = vector.broadcast %2 : vector<1x32xf32> to vector<16x32xf32>
    %23 = arith.mulf %21, %22 : vector<16x32xf32>
    %24 = vector.broadcast %3 : vector<1x32xf32> to vector<16x32xf32>
    %25 = arith.addf %23, %24 : vector<16x32xf32>
    %26 = arith.truncf %25 : vector<16x32xf32> to vector<16x32xbf16>
    %c0_10 = arith.constant 0 : index
    %c0_11 = arith.constant 0 : index
    %27 = vector.load %arg4[%c0_10, %c0_11] : memref<32x32xbf16, #tpu.memory_space<vmem>>, vector<32x32xbf16>
    %cst_12 = arith.constant dense<0.000000e+00> : vector<16x32xf32>
    %28 = tpu.matmul %26, %27, %cst_12 {dimension_numbers = #tpu.dot_dimension_numbers<[1], [0], [0], [1], [0, 0, 1, 1], [], []>} : vector<16x32xbf16>, vector<32x32xbf16>, vector<16x32xf32> -> vector<16x32xf32>
    %c0_13 = arith.constant 0 : index
    %c0_14 = arith.constant 0 : index
    %29 = vector.load %arg5[%c0_13, %c0_14] : memref<1x32xf32, #tpu.memory_space<vmem>>, vector<1x32xf32>
    %30 = vector.broadcast %29 : vector<1x32xf32> to vector<16x32xf32>
    %31 = arith.addf %28, %30 : vector<16x32xf32>
    %cst_15 = arith.constant 0.000000e+00 : f32
    %32 = vector.broadcast %cst_15 : f32 to vector<16x32xf32>
    %33 = arith.maximumf %31, %32 : vector<16x32xf32>
    %c0_16 = arith.constant 0 : index
    %c0_17 = arith.constant 0 : index
    %34 = vector.load %arg6[%c0_16, %c0_17] : memref<32x32xbf16, #tpu.memory_space<vmem>>, vector<32x32xbf16>
    %cst_18 = arith.constant dense<0.000000e+00> : vector<16x32xf32>
    %35 = tpu.matmul %26, %34, %cst_18 {dimension_numbers = #tpu.dot_dimension_numbers<[1], [0], [0], [1], [0, 0, 1, 1], [], []>} : vector<16x32xbf16>, vector<32x32xbf16>, vector<16x32xf32> -> vector<16x32xf32>
    %c0_19 = arith.constant 0 : index
    %c0_20 = arith.constant 0 : index
    %36 = vector.load %arg7[%c0_19, %c0_20] : memref<1x32xf32, #tpu.memory_space<vmem>>, vector<1x32xf32>
    %37 = vector.broadcast %36 : vector<1x32xf32> to vector<16x32xf32>
    %38 = arith.addf %35, %37 : vector<16x32xf32>
    %cst_21 = arith.constant 0.000000e+00 : f32
    %39 = vector.broadcast %cst_21 : f32 to vector<16x32xf32>
    %40 = arith.maximumf %38, %39 : vector<16x32xf32>
    %c0_22 = arith.constant 0 : index
    %c0_23 = arith.constant 0 : index
    %41 = vector.load %arg8[%c0_22, %c0_23] : memref<32x32xbf16, #tpu.memory_space<vmem>>, vector<32x32xbf16>
    %cst_24 = arith.constant dense<0.000000e+00> : vector<16x32xf32>
    %42 = tpu.matmul %26, %41, %cst_24 {dimension_numbers = #tpu.dot_dimension_numbers<[1], [0], [0], [1], [0, 0, 1, 1], [], []>} : vector<16x32xbf16>, vector<32x32xbf16>, vector<16x32xf32> -> vector<16x32xf32>
    %c0_25 = arith.constant 0 : index
    %c0_26 = arith.constant 0 : index
    %43 = vector.load %arg9[%c0_25, %c0_26] : memref<1x32xf32, #tpu.memory_space<vmem>>, vector<1x32xf32>
    %44 = vector.broadcast %43 : vector<1x32xf32> to vector<16x32xf32>
    %45 = arith.addf %42, %44 : vector<16x32xf32>
    %cst_27 = arith.constant 0.000000e+00 : f32
    %46 = vector.broadcast %cst_27 : f32 to vector<16x32xf32>
    %47 = arith.maximumf %45, %46 : vector<16x32xf32>
    %48 = arith.truncf %33 : vector<16x32xf32> to vector<16x32xbf16>
    %49 = vector.shape_cast %48 : vector<16x32xbf16> to vector<16x2x16xbf16>
    %50 = tpu.transpose %49, [1, 0, 2] : vector<16x2x16xbf16> -> vector<2x16x16xbf16>
    %51 = vector.shape_cast %50 : vector<2x16x16xbf16> to vector<4x8x16xbf16>
    %52 = arith.truncf %40 : vector<16x32xf32> to vector<16x32xbf16>
    %53 = vector.shape_cast %52 : vector<16x32xbf16> to vector<16x2x16xbf16>
    %54 = tpu.transpose %53, [1, 0, 2] : vector<16x2x16xbf16> -> vector<2x16x16xbf16>
    %55 = vector.shape_cast %54 : vector<2x16x16xbf16> to vector<4x8x16xbf16>
    %56 = arith.truncf %47 : vector<16x32xf32> to vector<16x32xbf16>
    %57 = vector.shape_cast %56 : vector<16x32xbf16> to vector<16x2x16xbf16>
    %58 = tpu.transpose %57, [1, 0, 2] : vector<16x2x16xbf16> -> vector<2x16x16xbf16>
    %59 = vector.shape_cast %58 : vector<2x16x16xbf16> to vector<4x8x16xbf16>
    %60 = tpu.iota {dimensions = array<i32: 0>} : vector<8x8xi32>
    %61 = tpu.iota {dimensions = array<i32: 1>} : vector<8x8xi32>
    %62 = arith.cmpi sle, %61, %60 : vector<8x8xi32>
    "tpu.trace_start"() <{level = 10 : i32, message = "gqd,gkd->gqk"}> : () -> ()
    %cst_28 = arith.constant dense<0.000000e+00> : vector<4x8x8xf32>
    %63 = tpu.matmul %51, %55, %cst_28 {dimension_numbers = #tpu.dot_dimension_numbers<[2], [2], [1], [1], [0, 0, 0, 1, 1, 1], [0], [0]>} : vector<4x8x16xbf16>, vector<4x8x16xbf16>, vector<4x8x8xf32> -> vector<4x8x8xf32>
    "tpu.trace_stop"() : () -> ()
    %64 = vector.shape_cast %62 : vector<8x8xi1> to vector<1x8x8xi1>
    %cst_29 = arith.constant 0.000000e+00 : f32
    %65 = vector.broadcast %cst_29 : f32 to vector<4x8x8xf32>
    %66 = arith.maximumf %63, %65 : vector<4x8x8xf32>
    %cst_30 = arith.constant 0.000000e+00 : f32
    %67 = vector.shape_cast %64 : vector<1x8x8xi1> to vector<1x8x8xi1>
    %68 = vector.broadcast %67 : vector<1x8x8xi1> to vector<4x8x8xi1>
    %69 = vector.broadcast %cst_30 : f32 to vector<4x8x8xf32>
    %70 = arith.select %68, %66, %69 : vector<4x8x8xi1>, vector<4x8x8xf32>
    %71 = arith.truncf %70 : vector<4x8x8xf32> to vector<4x8x8xbf16>
    "tpu.trace_start"() <{level = 10 : i32, message = "gqk,gkd->gqd"}> : () -> ()
    %cst_31 = arith.constant dense<0.000000e+00> : vector<4x8x16xf32>
    %72 = tpu.matmul %71, %59, %cst_31 {dimension_numbers = #tpu.dot_dimension_numbers<[2], [1], [1], [2], [0, 0, 0, 1, 1, 2], [0], [0]>} : vector<4x8x8xbf16>, vector<4x8x16xbf16>, vector<4x8x16xf32> -> vector<4x8x16xf32>
    "tpu.trace_stop"() : () -> ()
    %73 = vector.shape_cast %72 : vector<4x8x16xf32> to vector<2x16x16xf32>
    %74 = tpu.transpose %73, [1, 0, 2] : vector<2x16x16xf32> -> vector<16x2x16xf32>
    %75 = vector.shape_cast %74 : vector<16x2x16xf32> to vector<16x32xf32>
    %76 = arith.truncf %75 : vector<16x32xf32> to vector<16x32xbf16>
    %c0_32 = arith.constant 0 : index
    %c0_33 = arith.constant 0 : index
    %77 = vector.load %arg10[%c0_32, %c0_33] : memref<32x32xbf16, #tpu.memory_space<vmem>>, vector<32x32xbf16>
    %cst_34 = arith.constant dense<0.000000e+00> : vector<16x32xf32>
    %78 = tpu.matmul %76, %77, %cst_34 {dimension_numbers = #tpu.dot_dimension_numbers<[1], [0], [0], [1], [0, 0, 1, 1], [], []>} : vector<16x32xbf16>, vector<32x32xbf16>, vector<16x32xf32> -> vector<16x32xf32>
    %c0_35 = arith.constant 0 : index
    %c0_36 = arith.constant 0 : index
    %79 = vector.load %arg11[%c0_35, %c0_36] : memref<1x32xf32, #tpu.memory_space<vmem>>, vector<1x32xf32>
    %80 = vector.broadcast %79 : vector<1x32xf32> to vector<16x32xf32>
    %81 = arith.addf %78, %80 : vector<16x32xf32>
    %82 = arith.addf %1, %81 : vector<16x32xf32>
    %c0_37 = arith.constant 0 : index
    %c0_38 = arith.constant 0 : index
    %83 = vector.load %arg12[%c0_37, %c0_38] : memref<1x32xf32, #tpu.memory_space<vmem>>, vector<1x32xf32>
    %c0_39 = arith.constant 0 : index
    %c0_40 = arith.constant 0 : index
    %84 = vector.load %arg13[%c0_39, %c0_40] : memref<1x32xf32, #tpu.memory_space<vmem>>, vector<1x32xf32>
    %cst_41 = arith.constant dense<0.000000e+00> : vector<16xf32>
    %85 = vector.multi_reduction <add>, %82, %cst_41 [1] : vector<16x32xf32> to vector<16xf32>
    %86 = vector.shape_cast %85 : vector<16xf32> to vector<16x1xf32>
    %cst_42 = arith.constant 3.200000e+01 : f32
    %87 = vector.broadcast %cst_42 : f32 to vector<16x1xf32>
    %88 = arith.divf %86, %87 : vector<16x1xf32>
    %89 = vector.broadcast %88 : vector<16x1xf32> to vector<16x32xf32>
    %90 = arith.subf %82, %89 : vector<16x32xf32>
    %91 = arith.mulf %90, %90 : vector<16x32xf32>
    %cst_43 = arith.constant dense<0.000000e+00> : vector<16xf32>
    %92 = vector.multi_reduction <add>, %91, %cst_43 [1] : vector<16x32xf32> to vector<16xf32>
    %93 = vector.shape_cast %92 : vector<16xf32> to vector<16x1xf32>
    %cst_44 = arith.constant 3.200000e+01 : f32
    %94 = vector.broadcast %cst_44 : f32 to vector<16x1xf32>
    %95 = arith.divf %93, %94 : vector<16x1xf32>
    %96 = vector.broadcast %88 : vector<16x1xf32> to vector<16x32xf32>
    %97 = arith.subf %82, %96 : vector<16x32xf32>
    %cst_45 = arith.constant 9.99999974E-6 : f32
    %98 = vector.broadcast %cst_45 : f32 to vector<16x1xf32>
    %99 = arith.addf %95, %98 : vector<16x1xf32>
    %100 = math.rsqrt %99 : vector<16x1xf32>
    %101 = vector.broadcast %100 : vector<16x1xf32> to vector<16x32xf32>
    %102 = arith.mulf %97, %101 : vector<16x32xf32>
    %103 = vector.broadcast %83 : vector<1x32xf32> to vector<16x32xf32>
    %104 = arith.mulf %102, %103 : vector<16x32xf32>
    %105 = vector.broadcast %84 : vector<1x32xf32> to vector<16x32xf32>
    %106 = arith.addf %104, %105 : vector<16x32xf32>
    %107 = arith.truncf %106 : vector<16x32xf32> to vector<16x32xbf16>
    %c0_46 = arith.constant 0 : index
    %c0_47 = arith.constant 0 : index
    %108 = vector.load %arg14[%c0_46, %c0_47] : memref<32x64xbf16, #tpu.memory_space<vmem>>, vector<32x64xbf16>
    %cst_48 = arith.constant dense<0.000000e+00> : vector<16x64xf32>
    %109 = tpu.matmul %107, %108, %cst_48 {dimension_numbers = #tpu.dot_dimension_numbers<[1], [0], [0], [1], [0, 0, 1, 1], [], []>} : vector<16x32xbf16>, vector<32x64xbf16>, vector<16x64xf32> -> vector<16x64xf32>
    %c0_49 = arith.constant 0 : index
    %c0_50 = arith.constant 0 : index
    %110 = vector.load %arg15[%c0_49, %c0_50] : memref<1x64xf32, #tpu.memory_space<vmem>>, vector<1x64xf32>
    %111 = vector.broadcast %110 : vector<1x64xf32> to vector<16x64xf32>
    %112 = arith.addf %109, %111 : vector<16x64xf32>
    %cst_51 = arith.constant 0.000000e+00 : f32
    %113 = vector.broadcast %cst_51 : f32 to vector<16x64xf32>
    %114 = arith.maximumf %112, %113 : vector<16x64xf32>
    %115 = arith.truncf %114 : vector<16x64xf32> to vector<16x64xbf16>
    %c0_52 = arith.constant 0 : index
    %c0_53 = arith.constant 0 : index
    %116 = vector.load %arg16[%c0_52, %c0_53] : memref<64x32xbf16, #tpu.memory_space<vmem>>, vector<64x32xbf16>
    %cst_54 = arith.constant dense<0.000000e+00> : vector<16x32xf32>
    %117 = tpu.matmul %115, %116, %cst_54 {dimension_numbers = #tpu.dot_dimension_numbers<[1], [0], [0], [1], [0, 0, 1, 1], [], []>} : vector<16x64xbf16>, vector<64x32xbf16>, vector<16x32xf32> -> vector<16x32xf32>
    %c0_55 = arith.constant 0 : index
    %c0_56 = arith.constant 0 : index
    %118 = vector.load %arg17[%c0_55, %c0_56] : memref<1x32xf32, #tpu.memory_space<vmem>>, vector<1x32xf32>
    %119 = vector.broadcast %118 : vector<1x32xf32> to vector<16x32xf32>
    %120 = arith.addf %117, %119 : vector<16x32xf32>
    %121 = arith.addf %82, %120 : vector<16x32xf32>
    %122 = vector.shape_cast %121 : vector<16x32xf32> to vector<2x8x32xf32>
    %c0_57 = arith.constant 0 : index
    %c0_58 = arith.constant 0 : index
    %c0_59 = arith.constant 0 : index
    %123 = vector.load %arg18[%c0_57, %c0_58, %c0_59] : memref<2x8x32xf32, #tpu.memory_space<vmem>>, vector<2x8x32xf32>
    tpu.vector_store %arg18[%c0_57, %c0_58, %c0_59], %122 {strides = array<i32>} : memref<2x8x32xf32, #tpu.memory_space<vmem>>, vector<2x8x32xf32>,
    return
  }
  func.func @transform_0(%arg0: i32) -> (i32, i32, i32) {
    %c0_i32 = arith.constant 0 : i32
    %c0_i32_0 = arith.constant 0 : i32
    %c0_i32_1 = arith.constant 0 : i32
    return %arg0, %c0_i32, %c0_i32_0 : i32, i32, i32
  }
  func.func @transform_1(%arg0: i32) -> (i32, i32) {
    %c0_i32 = arith.constant 0 : i32
    %c0_i32_0 = arith.constant 0 : i32
    %c0_i32_1 = arith.constant 0 : i32
    return %c0_i32, %c0_i32_0 : i32, i32
  }
  func.func @transform_2(%arg0: i32) -> (i32, i32) {
    %c0_i32 = arith.constant 0 : i32
    %c0_i32_0 = arith.constant 0 : i32
    %c0_i32_1 = arith.constant 0 : i32
    return %c0_i32, %c0_i32_0 : i32, i32
  }
  func.func @transform_3(%arg0: i32) -> (i32, i32) {
    %c0_i32 = arith.constant 0 : i32
    %c0_i32_0 = arith.constant 0 : i32
    %c0_i32_1 = arith.constant 0 : i32
    return %c0_i32, %c0_i32_0 : i32, i32
  }
  func.func @transform_4(%arg0: i32) -> (i32, i32) {
    %c0_i32 = arith.constant 0 : i32
    %c0_i32_0 = arith.constant 0 : i32
    %c0_i32_1 = arith.constant 0 : i32
    return %c0_i32, %c0_i32_0 : i32, i32
  }
  func.func @transform_5(%arg0: i32) -> (i32, i32) {
    %c0_i32 = arith.constant 0 : i32
    %c0_i32_0 = arith.constant 0 : i32
    %c0_i32_1 = arith.constant 0 : i32
    return %c0_i32, %c0_i32_0 : i32, i32
  }
  func.func @transform_6(%arg0: i32) -> (i32, i32) {
    %c0_i32 = arith.constant 0 : i32
    %c0_i32_0 = arith.constant 0 : i32
    %c0_i32_1 = arith.constant 0 : i32
    return %c0_i32, %c0_i32_0 : i32, i32
  }
  func.func @transform_7(%arg0: i32) -> (i32, i32) {
    %c0_i32 = arith.constant 0 : i32
    %c0_i32_0 = arith.constant 0 : i32
    %c0_i32_1 = arith.constant 0 : i32
    return %c0_i32, %c0_i32_0 : i32, i32
  }
  func.func @transform_8(%arg0: i32) -> (i32, i32) {
    %c0_i32 = arith.constant 0 : i32
    %c0_i32_0 = arith.constant 0 : i32
    %c0_i32_1 = arith.constant 0 : i32
    return %c0_i32, %c0_i32_0 : i32, i32
  }
  func.func @transform_9(%arg0: i32) -> (i32, i32) {
    %c0_i32 = arith.constant 0 : i32
    %c0_i32_0 = arith.constant 0 : i32
    %c0_i32_1 = arith.constant 0 : i32
    return %c0_i32, %c0_i32_0 : i32, i32
  }
  func.func @transform_10(%arg0: i32) -> (i32, i32) {
    %c0_i32 = arith.constant 0 : i32
    %c0_i32_0 = arith.constant 0 : i32
    %c0_i32_1 = arith.constant 0 : i32
    return %c0_i32, %c0_i32_0 : i32, i32
  }
  func.func @transform_11(%arg0: i32) -> (i32, i32) {
    %c0_i32 = arith.constant 0 : i32
    %c0_i32_0 = arith.constant 0 : i32
    %c0_i32_1 = arith.constant 0 : i32
    return %c0_i32, %c0_i32_0 : i32, i32
  }
  func.func @transform_12(%arg0: i32) -> (i32, i32) {
    %c0_i32 = arith.constant 0 : i32
    %c0_i32_0 = arith.constant 0 : i32
    %c0_i32_1 = arith.constant 0 : i32
    return %c0_i32, %c0_i32_0 : i32, i32
  }
  func.func @transform_13(%arg0: i32) -> (i32, i32) {
    %c0_i32 = arith.constant 0 : i32
    %c0_i32_0 = arith.constant 0 : i32
    %c0_i32_1 = arith.constant 0 : i32
    return %c0_i32, %c0_i32_0 : i32, i32
  }
  func.func @transform_14(%arg0: i32) -> (i32, i32) {
    %c0_i32 = arith.constant 0 : i32
    %c0_i32_0 = arith.constant 0 : i32
    %c0_i32_1 = arith.constant 0 : i32
    return %c0_i32, %c0_i32_0 : i32, i32
  }
  func.func @transform_15(%arg0: i32) -> (i32, i32) {
    %c0_i32 = arith.constant 0 : i32
    %c0_i32_0 = arith.constant 0 : i32
    %c0_i32_1 = arith.constant 0 : i32
    return %c0_i32, %c0_i32_0 : i32, i32
  }
  func.func @transform_16(%arg0: i32) -> (i32, i32) {
    %c0_i32 = arith.constant 0 : i32
    %c0_i32_0 = arith.constant 0 : i32
    %c0_i32_1 = arith.constant 0 : i32
    return %c0_i32, %c0_i32_0 : i32, i32
  }
  func.func @transform_17(%arg0: i32) -> (i32, i32, i32) {
    %c0_i32 = arith.constant 0 : i32
    %c0_i32_0 = arith.constant 0 : i32
    %c0_i32_1 = arith.constant 0 : i32
    return %arg0, %c0_i32, %c0_i32_0 : i32, i32, i32
  }
}

</mosaic_0001>

<llo_original>
// kernel: tpu_custom_call.1
$region0: #{tpu_custom_call.1}
  #allocation0 [shape = 'u32[]', space=smem, size = 0x4, offset = 0x4, fixed_abs, tag = 'smem constant byte address 0x4 - core index']
  #allocation1 [shape = 'u32[144,128]{1,0:T(1,128)}', space=vmem, size = 0x12000, scoped, tag = 'internal scratch']
  %s0 = inlined_call_operand.vmem [shape: f32[2,8,32], index: 0, kind: input, shape index: {}]
  %s1 = inlined_call_operand.vmem [shape: f32[1,32], index: 1, kind: input, shape index: {}]
  %s2 = inlined_call_operand.vmem [shape: f32[1,32], index: 2, kind: input, shape index: {}]
  %s3 = inlined_call_operand.vmem [shape: bf16[32,32], index: 3, kind: input, shape index: {}]
  %s4 = inlined_call_operand.vmem [shape: f32[1,32], index: 4, kind: input, shape index: {}]
  %s5 = inlined_call_operand.vmem [shape: bf16[32,32], index: 5, kind: input, shape index: {}]
  %s6 = inlined_call_operand.vmem [shape: f32[1,32], index: 6, kind: input, shape index: {}]
  %s7 = inlined_call_operand.hbm [shape: bf16[32,32], index: 7, kind: input, shape index: {}]
  %s8 = inlined_call_operand.vmem [shape: f32[1,32], index: 8, kind: input, shape index: {}]
  %s9 = inlined_call_operand.hbm [shape: bf16[32,32], index: 9, kind: input, shape index: {}]
  %s10 = inlined_call_operand.vmem [shape: f32[1,32], index: 10, kind: input, shape index: {}]
  %s11 = inlined_call_operand.vmem [shape: f32[1,32], index: 11, kind: input, shape index: {}]
  %s12 = inlined_call_operand.vmem [shape: f32[1,32], index: 12, kind: input, shape index: {}]
  %s13 = inlined_call_operand.hbm [shape: bf16[32,64], index: 13, kind: input, shape index: {}]
  %s14 = inlined_call_operand.vmem [shape: f32[1,64], index: 14, kind: input, shape index: {}]
  %s15 = inlined_call_operand.vmem [shape: bf16[64,32], index: 15, kind: input, shape index: {}]
  %s16 = inlined_call_operand.vmem [shape: f32[1,32], index: 16, kind: input, shape index: {}]
  %s17 = inlined_call_operand.hbm [shape: f32[2,8,32], index: 17, kind: output, shape index: {}]
  %s18 = sld [smem:[#allocation0]]
  $region90: #{tpu_custom_call.1} parent=0
    _
  %s20 = ssub.s32 1, %s18
  %s21 = scalar_select 0, %s20, %s18
  $region1: #{tpu_custom_call.1} parent=0
    #allocation2 [shape = 'u8[8192]{0}', space=vmem, size = 0x2000, scoped, tag = 'input window, operand 7, single buffered']
    #allocation3 [shape = 's32[1]{0}', space=sflag, size = 0x4, scoped, tag = 'scoped memory for tpu_custom_call.1']
    #allocation4 [shape = 's32[1]{0}', space=sflag, size = 0x4, scoped, tag = 'scoped memory for tpu_custom_call.1']
    #allocation5 [shape = 'u8[8192]{0}', space=vmem, size = 0x2000, scoped, tag = 'input window, operand 9, single buffered']
    #allocation6 [shape = 's32[1]{0}', space=sflag, size = 0x4, scoped, tag = 'scoped memory for tpu_custom_call.1']
    #allocation7 [shape = 'u8[8192]{0}', space=vmem, size = 0x2000, scoped, tag = 'input window, operand 13, single buffered']
    #allocation8 [shape = 'u8[8192]{0}', space=vmem, size = 0x2000, scoped, tag = 'output window, operand 0, single buffered']
    %22 = vsyncpa [#allocation3], 0
    %23 = vsyncpa [#allocation6], 0
    %24 = vsyncpa [#allocation4], 0
    // Predicated region
    $region2: #{tpu_custom_call.1} parent=1 // pred_check
      _
    $region3: #{tpu_custom_call.1} parent=1 // pred_check_branch
      %26 = sbr.rel (0) target = $region5
    $region4: #{tpu_custom_call.1} parent=1 // pred_region
      _
    $region5: #{tpu_custom_call.1} parent=1 // pred_fallthru
      _
    // Predicated region
    $region6: #{tpu_custom_call.1} parent=1 // pred_check
      _
    $region7: #{tpu_custom_call.1} parent=1 // pred_check_branch
      %28 = sbr.rel (0) target = $region9
    $region8: #{tpu_custom_call.1} parent=1 // pred_region
      _
    $region9: #{tpu_custom_call.1} parent=1 // pred_fallthru
      _
    // Predicated region
    $region10: #{tpu_custom_call.1} parent=1 // pred_check
      _
    $region11: #{tpu_custom_call.1} parent=1 // pred_check_branch
      %30 = sbr.rel (0) target = $region13
    $region12: #{tpu_custom_call.1} parent=1 // pred_region
      _
    $region13: #{tpu_custom_call.1} parent=1 // pred_fallthru
      _
    // Predicated region
    $region14: #{tpu_custom_call.1} parent=1 // pred_check
      _
    $region15: #{tpu_custom_call.1} parent=1 // pred_check_branch
      %32 = sbr.rel (0) target = $region17
    $region16: #{tpu_custom_call.1} parent=1 // pred_region
      _
    $region17: #{tpu_custom_call.1} parent=1 // pred_fallthru
      _
    // Predicated region
    $region18: #{tpu_custom_call.1} parent=1 // pred_check
      _
    $region19: #{tpu_custom_call.1} parent=1 // pred_check_branch
      %34 = sbr.rel (0) target = $region21
    $region20: #{tpu_custom_call.1} parent=1 // pred_region
      _
    $region21: #{tpu_custom_call.1} parent=1 // pred_fallthru
      _
    // Predicated region
    $region22: #{tpu_custom_call.1} parent=1 // pred_check
      _
    $region23: #{tpu_custom_call.1} parent=1 // pred_check_branch
      %36 = sbr.rel (0) target = $region25
    $region24: #{tpu_custom_call.1} parent=1 // pred_region
      _
    $region25: #{tpu_custom_call.1} parent=1 // pred_fallthru
      _
    // Predicated region
    $region26: #{tpu_custom_call.1} parent=1 // pred_check
      _
    $region27: #{tpu_custom_call.1} parent=1 // pred_check_branch
      %38 = sbr.rel (0) target = $region29
    $region28: #{tpu_custom_call.1} parent=1 // pred_region
      _
    $region29: #{tpu_custom_call.1} parent=1 // pred_fallthru
      _
    // Predicated region
    $region30: #{tpu_custom_call.1} parent=1 // pred_check
      _
    $region31: #{tpu_custom_call.1} parent=1 // pred_check_branch
      %40 = sbr.rel (0) target = $region33
    $region32: #{tpu_custom_call.1} parent=1 // pred_region
      %s42 = ssub.s32 256, 256
      %43 = vsyncadd [#allocation3], %s42
      %s44 = sshll.u32 [#allocation2], 4
      %s45 = int_to_ptr.vmem [resolvable:$true] %s44
      %50 = dma.hbm_to_vmem [thread:$0]  %s7, 256, %s45, [#allocation3], 64, 64, 4
    $region33: #{tpu_custom_call.1} parent=1 // pred_fallthru
      _
    // Predicated region
    $region34: #{tpu_custom_call.1} parent=1 // pred_check
      _
    $region35: #{tpu_custom_call.1} parent=1 // pred_check_branch
      %52 = sbr.rel (0) target = $region37
    $region36: #{tpu_custom_call.1} parent=1 // pred_region
      _
    $region37: #{tpu_custom_call.1} parent=1 // pred_fallthru
      _
    // Predicated region
    $region38: #{tpu_custom_call.1} parent=1 // pred_check
      _
    $region39: #{tpu_custom_call.1} parent=1 // pred_check_branch
      %54 = sbr.rel (0) target = $region41
    $region40: #{tpu_custom_call.1} parent=1 // pred_region
      %s56 = ssub.s32 256, 256
      %57 = vsyncadd [#allocation6], %s56
      %s58 = sshll.u32 [#allocation5], 4
      %s59 = int_to_ptr.vmem [resolvable:$true] %s58
      %64 = dma.hbm_to_vmem [thread:$0]  %s9, 256, %s59, [#allocation6], 64, 64, 4
    $region41: #{tpu_custom_call.1} parent=1 // pred_fallthru
      _
    // Predicated region
    $region42: #{tpu_custom_call.1} parent=1 // pred_check
      _
    $region43: #{tpu_custom_call.1} parent=1 // pred_check_branch
      %66 = sbr.rel (0) target = $region45
    $region44: #{tpu_custom_call.1} parent=1 // pred_region
      _
    $region45: #{tpu_custom_call.1} parent=1 // pred_fallthru
      _
    // Predicated region
    $region46: #{tpu_custom_call.1} parent=1 // pred_check
      _
    $region47: #{tpu_custom_call.1} parent=1 // pred_check_branch
      %68 = sbr.rel (0) target = $region49
    $region48: #{tpu_custom_call.1} parent=1 // pred_region
      _
    $region49: #{tpu_custom_call.1} parent=1 // pred_fallthru
      _
    // Predicated region
    $region50: #{tpu_custom_call.1} parent=1 // pred_check
      _
    $region51: #{tpu_custom_call.1} parent=1 // pred_check_branch
      %70 = sbr.rel (0) target = $region53
    $region52: #{tpu_custom_call.1} parent=1 // pred_region
      _
    $region53: #{tpu_custom_call.1} parent=1 // pred_fallthru
      _
    // Predicated region
    $region54: #{tpu_custom_call.1} parent=1 // pred_check
      _
    $region55: #{tpu_custom_call.1} parent=1 // pred_check_branch
      %72 = sbr.rel (0) target = $region57
    $region56: #{tpu_custom_call.1} parent=1 // pred_region
      %s74 = ssub.s32 256, 256
      %75 = vsyncadd [#allocation6], %s74
      %s76 = sshll.u32 [#allocation7], 4
      %s77 = int_to_ptr.vmem [resolvable:$true] %s76
      %82 = dma.hbm_to_vmem [thread:$0]  %s13, 256, %s77, [#allocation6], 64, 64, 4
    $region57: #{tpu_custom_call.1} parent=1 // pred_fallthru
      _
    // Predicated region
    $region58: #{tpu_custom_call.1} parent=1 // pred_check
      _
    $region59: #{tpu_custom_call.1} parent=1 // pred_check_branch
      %84 = sbr.rel (0) target = $region61
    $region60: #{tpu_custom_call.1} parent=1 // pred_region
      _
    $region61: #{tpu_custom_call.1} parent=1 // pred_fallthru
      _
    // Predicated region
    $region62: #{tpu_custom_call.1} parent=1 // pred_check
      _
    $region63: #{tpu_custom_call.1} parent=1 // pred_check_branch
      %86 = sbr.rel (0) target = $region65
    $region64: #{tpu_custom_call.1} parent=1 // pred_region
      _
    $region65: #{tpu_custom_call.1} parent=1 // pred_fallthru
      _
    // Predicated region
    $region66: #{tpu_custom_call.1} parent=1 // pred_check
      _
    $region67: #{tpu_custom_call.1} parent=1 // pred_check_branch
      %88 = sbr.rel (0) target = $region69
    $region68: #{tpu_custom_call.1} parent=1 // pred_region
      _
    $region69: #{tpu_custom_call.1} parent=1 // pred_fallthru
      _
    // Predicated region
    $region70: #{tpu_custom_call.1} parent=1 // pred_check
      _
    $region71: #{tpu_custom_call.1} parent=1 // pred_check_branch
      %90 = sbr.rel (0) target = $region73
    $region72: #{tpu_custom_call.1} parent=1 // pred_region
      %91 = dma.done [#allocation3], 256
    $region73: #{tpu_custom_call.1} parent=1 // pred_fallthru
      _
    // Predicated region
    $region74: #{tpu_custom_call.1} parent=1 // pred_check
      _
    $region75: #{tpu_custom_call.1} parent=1 // pred_check_branch
      %93 = sbr.rel (0) target = $region77
    $region76: #{tpu_custom_call.1} parent=1 // pred_region
      %94 = dma.done [#allocation6], 256
    $region77: #{tpu_custom_call.1} parent=1 // pred_fallthru
      _
    // Predicated region
    $region78: #{tpu_custom_call.1} parent=1 // pred_check
      _
    $region79: #{tpu_custom_call.1} parent=1 // pred_check_branch
      %96 = sbr.rel (0) target = $region81
    $region80: #{tpu_custom_call.1} parent=1 // pred_region
      %97 = dma.done [#allocation6], 256
    $region81: #{tpu_custom_call.1} parent=1 // pred_fallthru
      _
    %v99 = vld [vmem:[%s0] sm:$0xff]
    %v100 = vld [vmem:[%s0 + $0x8] sm:$0xff]
    %v101 = vld [vmem:[%s1] sm:$0x1]
    %v102 = vld [vmem:[%s2] sm:$0x1]
    %vm103 = vcmask 261120
    %v104 = vsel %vm103, %v99, 0.0
    %105 = vadd.xlane.f32.xlu0 %v104
    %v106 = vpop.xlane.xlu0 %105
    %v107 = vsel %vm103, %v100, 0.0
    %108 = vadd.xlane.f32.xlu0 %v107
    %v109 = vpop.xlane.xlu0 %108
    %v110 = vrcp.pop 32.0
    %v111 = vmul.f32 %v106, %v110
    %v112 = vmul.f32 %v109, %v110
    %v113 = vsub.f32 %v99, %v111
    %v114 = vsub.f32 %v100, %v112
    %v115 = vmul.f32 %v113, %v113
    %v116 = vmul.f32 %v114, %v114
    %v117 = vsel %vm103, %v115, 0.0
    %118 = vadd.xlane.f32.xlu0 %v117
    %v119 = vpop.xlane.xlu0 %118
    %v120 = vsel %vm103, %v116, 0.0
    %121 = vadd.xlane.f32.xlu0 %v120
    %v122 = vpop.xlane.xlu0 %121
    %v123 = vmul.f32 %v119, %v110
    %v124 = vmul.f32 %v122, %v110
    %v125 = vadd.f32 %v123, 1e-05
    %v126 = vadd.f32 %v124, 1e-05
    %v127 = vrsqrt.pop %v125
    %v128 = vrsqrt.pop %v126
    %v129 = vmul.f32 %v113, %v127
    %v130 = vmul.f32 %v114, %v128
    %v132 = vlaneseq
    %v133 = vshrl.u32 %v132, 7
    %v134 = vsub.s32 0, %v133
    %v135 = vrot.slane %v101, %v134
    %v137 = vmul.f32 %v129, %v135
    %v138 = vmul.f32 %v130, %v135
    %v140 = vlaneseq
    %v141 = vshrl.u32 %v140, 7
    %v142 = vsub.s32 0, %v141
    %v143 = vrot.slane %v102, %v142
    %v145 = vadd.f32 %v137, %v143
    %v146 = vadd.f32 %v138, %v143
    %v147 = vpack.c.bf16 %v146, %v145
    %v148 = vld [vmem:[%s3] sm:$0xf]
    %v149 = vld [vmem:[%s3 + $0x4] sm:$0xf]
    %v150 = vld [vmem:[%s3 + $0x8] sm:$0xf]
    %v151 = vld [vmem:[%s3 + $0xc] sm:$0xf]
    %v152 = vld [vmem:[%s4] sm:$0x1]
    %v154 = vlaneseq
    %v155 = vshrl.u32 %v154, 7
    %v156 = vsub.s32 0, %v155
    %v157 = vrot.slane %v152, %v156
    %v163 = vunpack.c.l.b16 %v148
    %v164 = vunpack.c.l.b16 %v149
    %v165 = vunpack.c.l.b16 %v150
    %v166 = vunpack.c.l.b16 %v151
    %v167 = vpack.c.b16 %v164, %v163
    %v168 = vpack.c.b16 %v166, %v165
    %v172 = vsel %vm103, %v147, 0
    %174 = vmatprep.subr.bf16.mxu0 0
    %175 = vmatpush1.bf16.msra.mxu0 0
    %176 = vmatprep.subr.bf16.mxu0 0
    %177 = vmatpush1.bf16.msra.mxu0 0
    %178 = vmatprep.subr.bf16.mxu0 0
    %179 = vmatpush1.bf16.msra.mxu0 0
    %180 = vmatprep.subr.bf16.mxu0 0
    %181 = vmatpush1.bf16.msra.mxu0 0
    %182 = vmatprep.subr.bf16.mxu0 0
    %183 = vmatpush1.bf16.msra.mxu0 0
    %184 = vmatprep.subr.bf16.mxu0 0
    %185 = vmatpush1.bf16.msra.mxu0 0
    %186 = vmatprep.subr.bf16.mxu0 0
    %187 = vmatpush1.bf16.msra.mxu0 %v168
    %188 = vmatprep.subr.bf16.mxu0 0
    %189 = vmatpush1.bf16.msra.mxu0 %v167
    %190 = vmatprep.subr.bf16.mxu0 0
    %191 = vmatpush2.bf16.msra.mxu0 0
    %192 = vmatprep.subr.bf16.mxu0 0
    %193 = vmatpush2.bf16.msra.mxu0 0
    %194 = vmatprep.subr.bf16.mxu0 0
    %195 = vmatpush2.bf16.msra.mxu0 0
    %196 = vmatprep.subr.bf16.mxu0 0
    %197 = vmatpush2.bf16.msra.mxu0 0
    %198 = vmatprep.subr.bf16.mxu0 0
    %199 = vmatpush2.bf16.msra.mxu0 0
    %200 = vmatprep.subr.bf16.mxu0 0
    %201 = vmatpush2.bf16.msra.mxu0 0
    %202 = vmatprep.subr.bf16.mxu0 0
    %203 = vmatpush2.bf16.msra.mxu0 0
    %204 = vmatprep.subr.bf16.mxu0 0
    %205 = vmatpush2.bf16.msra.mxu0 0
    %206 = vmatprep.mubr.bf16.mxu0 0
    %207 = vmatmul.mubr.bf16.gmra.mxu0 %v172
    %v208 = vpop.f32.mrf.mxu0
    %v209 = vadd.f32 %v157, %v208
    %v210 = vpop.f32.mrf.mxu0
    %v211 = vpop.f32.mrf.mxu0
    %v212 = vadd.f32 %v157, %v211
    %v213 = vpop.f32.mrf.mxu0
    %214 = vdwg.mxu0
    %v215 = vmax.f32 %v209, 0.0
    %v216 = vmax.f32 %v212, 0.0
    %v217 = vld [vmem:[%s5] sm:$0xf]
    %v218 = vld [vmem:[%s5 + $0x4] sm:$0xf]
    %v219 = vld [vmem:[%s5 + $0x8] sm:$0xf]
    %v220 = vld [vmem:[%s5 + $0xc] sm:$0xf]
    %v221 = vld [vmem:[%s6] sm:$0x1]
    %v223 = vlaneseq
    %v224 = vshrl.u32 %v223, 7
    %v225 = vsub.s32 0, %v224
    %v226 = vrot.slane %v221, %v225
    %v232 = vunpack.c.l.b16 %v217
    %v233 = vunpack.c.l.b16 %v218
    %v234 = vunpack.c.l.b16 %v219
    %v235 = vunpack.c.l.b16 %v220
    %v236 = vpack.c.b16 %v233, %v232
    %v237 = vpack.c.b16 %v235, %v234
    %240 = vmatprep.subr.bf16.mxu0 0
    %241 = vmatpush1.bf16.msra.mxu0 0
    %242 = vmatprep.subr.bf16.mxu0 0
    %243 = vmatpush1.bf16.msra.mxu0 0
    %244 = vmatprep.subr.bf16.mxu0 0
    %245 = vmatpush1.bf16.msra.mxu0 0
    %246 = vmatprep.subr.bf16.mxu0 0
    %247 = vmatpush1.bf16.msra.mxu0 0
    %248 = vmatprep.subr.bf16.mxu0 0
    %249 = vmatpush1.bf16.msra.mxu0 0
    %250 = vmatprep.subr.bf16.mxu0 0
    %251 = vmatpush1.bf16.msra.mxu0 0
    %252 = vmatprep.subr.bf16.mxu0 0
    %253 = vmatpush1.bf16.msra.mxu0 %v237
    %254 = vmatprep.subr.bf16.mxu0 0
    %255 = vmatpush1.bf16.msra.mxu0 %v236
    %256 = vmatprep.subr.bf16.mxu0 0
    %257 = vmatpush2.bf16.msra.mxu0 0
    %258 = vmatprep.subr.bf16.mxu0 0
    %259 = vmatpush2.bf16.msra.mxu0 0
    %260 = vmatprep.subr.bf16.mxu0 0
    %261 = vmatpush2.bf16.msra.mxu0 0
    %262 = vmatprep.subr.bf16.mxu0 0
    %263 = vmatpush2.bf16.msra.mxu0 0
    %264 = vmatprep.subr.bf16.mxu0 0
    %265 = vmatpush2.bf16.msra.mxu0 0
    %266 = vmatprep.subr.bf16.mxu0 0
    %267 = vmatpush2.bf16.msra.mxu0 0
    %268 = vmatprep.subr.bf16.mxu0 0
    %269 = vmatpush2.bf16.msra.mxu0 0
    %270 = vmatprep.subr.bf16.mxu0 0
    %271 = vmatpush2.bf16.msra.mxu0 0
    %272 = vmatprep.mubr.bf16.mxu0 0
    %273 = vmatmul.mubr.bf16.gmra.mxu0 %v172
    %v274 = vpop.f32.mrf.mxu0
    %v275 = vadd.f32 %v226, %v274
    %v276 = vpop.f32.mrf.mxu0
    %v277 = vpop.f32.mrf.mxu0
    %v278 = vadd.f32 %v226, %v277
    %v279 = vpop.f32.mrf.mxu0
    %280 = vdwg.mxu0
    %v281 = vmax.f32 %v275, 0.0
    %v282 = vmax.f32 %v278, 0.0
    %v283 = vld [vmem:[#allocation2] sm:$0xf]
    %v284 = vld [vmem:[#allocation2 + $0x4] sm:$0xf]
    %v285 = vld [vmem:[#allocation2 + $0x8] sm:$0xf]
    %v286 = vld [vmem:[#allocation2 + $0xc] sm:$0xf]
    %v287 = vld [vmem:[%s8] sm:$0x1]
    %v289 = vlaneseq
    %v290 = vshrl.u32 %v289, 7
    %v291 = vsub.s32 0, %v290
    %v292 = vrot.slane %v287, %v291
    %v298 = vunpack.c.l.b16 %v283
    %v299 = vunpack.c.l.b16 %v284
    %v300 = vunpack.c.l.b16 %v285
    %v301 = vunpack.c.l.b16 %v286
    %v302 = vpack.c.b16 %v299, %v298
    %v303 = vpack.c.b16 %v301, %v300
    %306 = vmatprep.subr.bf16.mxu0 0
    %307 = vmatpush1.bf16.msra.mxu0 0
    %308 = vmatprep.subr.bf16.mxu0 0
    %309 = vmatpush1.bf16.msra.mxu0 0
    %310 = vmatprep.subr.bf16.mxu0 0
    %311 = vmatpush1.bf16.msra.mxu0 0
    %312 = vmatprep.subr.bf16.mxu0 0
    %313 = vmatpush1.bf16.msra.mxu0 0
    %314 = vmatprep.subr.bf16.mxu0 0
    %315 = vmatpush1.bf16.msra.mxu0 0
    %316 = vmatprep.subr.bf16.mxu0 0
    %317 = vmatpush1.bf16.msra.mxu0 0
    %318 = vmatprep.subr.bf16.mxu0 0
    %319 = vmatpush1.bf16.msra.mxu0 %v303
    %320 = vmatprep.subr.bf16.mxu0 0
    %321 = vmatpush1.bf16.msra.mxu0 %v302
    %322 = vmatprep.subr.bf16.mxu0 0
    %323 = vmatpush2.bf16.msra.mxu0 0
    %324 = vmatprep.subr.bf16.mxu0 0
    %325 = vmatpush2.bf16.msra.mxu0 0
    %326 = vmatprep.subr.bf16.mxu0 0
    %327 = vmatpush2.bf16.msra.mxu0 0
    %328 = vmatprep.subr.bf16.mxu0 0
    %329 = vmatpush2.bf16.msra.mxu0 0
    %330 = vmatprep.subr.bf16.mxu0 0
    %331 = vmatpush2.bf16.msra.mxu0 0
    %332 = vmatprep.subr.bf16.mxu0 0
    %333 = vmatpush2.bf16.msra.mxu0 0
    %334 = vmatprep.subr.bf16.mxu0 0
    %335 = vmatpush2.bf16.msra.mxu0 0
    %336 = vmatprep.subr.bf16.mxu0 0
    %337 = vmatpush2.bf16.msra.mxu0 0
    %338 = vmatprep.mubr.bf16.mxu0 0
    %339 = vmatmul.mubr.bf16.gmra.mxu0 %v172
    %v340 = vpop.f32.mrf.mxu0
    %v341 = vadd.f32 %v292, %v340
    %v342 = vpop.f32.mrf.mxu0
    %v343 = vpop.f32.mrf.mxu0
    %v344 = vadd.f32 %v292, %v343
    %v345 = vpop.f32.mrf.mxu0
    %346 = vdwg.mxu0
    %v347 = vmax.f32 %v341, 0.0
    %v348 = vmax.f32 %v344, 0.0
    %v349 = vpack.c.bf16 %v216, %v215
    %351 = vrot.lane.b32.xlu0 %v349, 112
    %v352 = vpop.permute.xlu0 %351
    %v355 = vpack.i.b16 %v352, %v349
    %v357 = vshrl.u32 %v349, 16
    %v358 = vshrl.u32 %v352, 16
    %v359 = vpack.i.b16 %v358, %v357
    %v362 = vpack.i.b16 0, 0
    %v364 = vshrl.u32 0, 16
    %v365 = vpack.i.b16 %v364, %v364
    %v367 = vcombine.high %v355, %v362
    %v369 = vunpack.c.l.s4 1983009808
    %v370 = vunpack.c.0.s8 %v369
    %v371 = vlaneseq
    %v372 = vshrl.u32 %v371, 7
    %v373 = vsub.s32 %v370, %v372
    %v374 = vrot.slane %v355, %v373
    %v376 = vunpack.c.l.s4 1983009808
    %v377 = vunpack.c.0.s8 %v376
    %v378 = vlaneseq
    %v379 = vshrl.u32 %v378, 7
    %v380 = vsub.s32 %v377, %v379
    %v381 = vrot.slane %v367, %v380
    %v382 = vcombine.high %v374, 0
    %v384 = vunpack.c.l.s4 1934713408
    %v385 = vunpack.c.0.s8 %v384
    %v386 = vlaneseq
    %v387 = vshrl.u32 %v386, 7
    %v388 = vsub.s32 %v385, %v387
    %v389 = vrot.slane %v374, %v388
    %v391 = vunpack.c.l.s4 1934713408
    %v392 = vunpack.c.0.s8 %v391
    %v393 = vlaneseq
    %v394 = vshrl.u32 %v393, 7
    %v395 = vsub.s32 %v392, %v394
    %v396 = vrot.slane %v382, %v395
    %v397 = vcombine.high %v381, 0
    %v399 = vunpack.c.l.s4 1934713408
    %v400 = vunpack.c.0.s8 %v399
    %v401 = vlaneseq
    %v402 = vshrl.u32 %v401, 7
    %v403 = vsub.s32 %v400, %v402
    %v404 = vrot.slane %v381, %v403
    %v406 = vunpack.c.l.s4 1934713408
    %v407 = vunpack.c.0.s8 %v406
    %v408 = vlaneseq
    %v409 = vshrl.u32 %v408, 7
    %v410 = vsub.s32 %v407, %v409
    %v411 = vrot.slane %v397, %v410
    %v412 = vcombine.high %v389, 0
    %v413 = vcombine.high %v396, 0
    %v414 = vcombine.high %v404, 0
    %v415 = vcombine.high %v411, 0
    %v416 = vcombine.high %v359, %v365
    %v418 = vunpack.c.l.s4 1983009808
    %v419 = vunpack.c.0.s8 %v418
    %v420 = vlaneseq
    %v421 = vshrl.u32 %v420, 7
    %v422 = vsub.s32 %v419, %v421
    %v423 = vrot.slane %v359, %v422
    %v425 = vunpack.c.l.s4 1983009808
    %v426 = vunpack.c.0.s8 %v425
    %v427 = vlaneseq
    %v428 = vshrl.u32 %v427, 7
    %v429 = vsub.s32 %v426, %v428
    %v430 = vrot.slane %v416, %v429
    %v431 = vcombine.high %v423, 0
    %v433 = vunpack.c.l.s4 1934713408
    %v434 = vunpack.c.0.s8 %v433
    %v435 = vlaneseq
    %v436 = vshrl.u32 %v435, 7
    %v437 = vsub.s32 %v434, %v436
    %v438 = vrot.slane %v423, %v437
    %v440 = vunpack.c.l.s4 1934713408
    %v441 = vunpack.c.0.s8 %v440
    %v442 = vlaneseq
    %v443 = vshrl.u32 %v442, 7
    %v444 = vsub.s32 %v441, %v443
    %v445 = vrot.slane %v431, %v444
    %v446 = vcombine.high %v430, 0
    %v448 = vunpack.c.l.s4 1934713408
    %v449 = vunpack.c.0.s8 %v448
    %v450 = vlaneseq
    %v451 = vshrl.u32 %v450, 7
    %v452 = vsub.s32 %v449, %v451
    %v453 = vrot.slane %v430, %v452
    %v455 = vunpack.c.l.s4 1934713408
    %v456 = vunpack.c.0.s8 %v455
    %v457 = vlaneseq
    %v458 = vshrl.u32 %v457, 7
    %v459 = vsub.s32 %v456, %v458
    %v460 = vrot.slane %v446, %v459
    %v461 = vcombine.high %v438, 0
    %v462 = vcombine.high %v445, 0
    %v463 = vcombine.high %v453, 0
    %v464 = vcombine.high %v460, 0
    %v465 = vcombine.low %v389, %v396
    %v467 = vunpack.c.l.s4 1983009808
    %v468 = vunpack.c.0.s8 %v467
    %v469 = vlaneseq
    %v470 = vshrl.u32 %v469, 7
    %v471 = vsub.s32 %v468, %v470
    %v472 = vrot.slane %v465, %v471
    %v473 = vcombine.low %v412, %v413
    %v475 = vunpack.c.l.s4 1983009808
    %v476 = vunpack.c.0.s8 %v475
    %v477 = vlaneseq
    %v478 = vshrl.u32 %v477, 7
    %v479 = vsub.s32 %v476, %v478
    %v480 = vrot.slane %v473, %v479
    %v481 = vcombine.low %v404, %v411
    %v483 = vunpack.c.l.s4 1983009808
    %v484 = vunpack.c.0.s8 %v483
    %v485 = vlaneseq
    %v486 = vshrl.u32 %v485, 7
    %v487 = vsub.s32 %v484, %v486
    %v488 = vrot.slane %v481, %v487
    %v489 = vcombine.low %v414, %v415
    %v491 = vunpack.c.l.s4 1983009808
    %v492 = vunpack.c.0.s8 %v491
    %v493 = vlaneseq
    %v494 = vshrl.u32 %v493, 7
    %v495 = vsub.s32 %v492, %v494
    %v496 = vrot.slane %v489, %v495
    %v497 = vcombine.low %v472, %v480
    %v499 = vunpack.c.l.s4 1934713408
    %v500 = vunpack.c.0.s8 %v499
    %v501 = vlaneseq
    %v502 = vshrl.u32 %v501, 7
    %v503 = vsub.s32 %v500, %v502
    %v504 = vrot.slane %v497, %v503
    %v505 = vcombine.low %v488, %v496
    %v507 = vunpack.c.l.s4 1934713408
    %v508 = vunpack.c.0.s8 %v507
    %v509 = vlaneseq
    %v510 = vshrl.u32 %v509, 7
    %v511 = vsub.s32 %v508, %v510
    %v512 = vrot.slane %v505, %v511
    %v513 = vcombine.low %v504, %v512
    %v514 = vcombine.low %v438, %v445
    %v516 = vunpack.c.l.s4 1983009808
    %v517 = vunpack.c.0.s8 %v516
    %v518 = vlaneseq
    %v519 = vshrl.u32 %v518, 7
    %v520 = vsub.s32 %v517, %v519
    %v521 = vrot.slane %v514, %v520
    %v522 = vcombine.low %v461, %v462
    %v524 = vunpack.c.l.s4 1983009808
    %v525 = vunpack.c.0.s8 %v524
    %v526 = vlaneseq
    %v527 = vshrl.u32 %v526, 7
    %v528 = vsub.s32 %v525, %v527
    %v529 = vrot.slane %v522, %v528
    %v530 = vcombine.low %v453, %v460
    %v532 = vunpack.c.l.s4 1983009808
    %v533 = vunpack.c.0.s8 %v532
    %v534 = vlaneseq
    %v535 = vshrl.u32 %v534, 7
    %v536 = vsub.s32 %v533, %v535
    %v537 = vrot.slane %v530, %v536
    %v538 = vcombine.low %v463, %v464
    %v540 = vunpack.c.l.s4 1983009808
    %v541 = vunpack.c.0.s8 %v540
    %v542 = vlaneseq
    %v543 = vshrl.u32 %v542, 7
    %v544 = vsub.s32 %v541, %v543
    %v545 = vrot.slane %v538, %v544
    %v546 = vcombine.low %v521, %v529
    %v548 = vunpack.c.l.s4 1934713408
    %v549 = vunpack.c.0.s8 %v548
    %v550 = vlaneseq
    %v551 = vshrl.u32 %v550, 7
    %v552 = vsub.s32 %v549, %v551
    %v553 = vrot.slane %v546, %v552
    %v554 = vcombine.low %v537, %v545
    %v556 = vunpack.c.l.s4 1934713408
    %v557 = vunpack.c.0.s8 %v556
    %v558 = vlaneseq
    %v559 = vshrl.u32 %v558, 7
    %v560 = vsub.s32 %v557, %v559
    %v561 = vrot.slane %v554, %v560
    %v562 = vcombine.low %v553, %v561
    %v565 = vpack.i.b16 %v562, %v513
    %v566 = vshrl.u32 %v513, 16
    %v567 = vshrl.u32 %v562, 16
    %v568 = vpack.i.b16 %v567, %v566
    %v569 = vunpack.c.l.b16 %v565
    %v570 = vunpack.c.h.b16 %v565
    %v571 = vunpack.c.l.b16 %v568
    %v572 = vunpack.c.h.b16 %v568
    %v573 = vpack.c.b16 %v569, %v569
    %v574 = vpack.c.b16 %v570, %v570
    %v575 = vpack.c.b16 %v571, %v571
    %v576 = vpack.c.b16 %v572, %v572
    %v577 = vpack.c.bf16 %v282, %v281
    %579 = vrot.lane.b32.xlu0 %v577, 112
    %v580 = vpop.permute.xlu0 %579
    %v583 = vpack.i.b16 %v580, %v577
    %v585 = vshrl.u32 %v577, 16
    %v586 = vshrl.u32 %v580, 16
    %v587 = vpack.i.b16 %v586, %v585
    %v589 = vcombine.high %v583, %v362
    %v591 = vunpack.c.l.s4 1983009808
    %v592 = vunpack.c.0.s8 %v591
    %v593 = vlaneseq
    %v594 = vshrl.u32 %v593, 7
    %v595 = vsub.s32 %v592, %v594
    %v596 = vrot.slane %v583, %v595
    %v598 = vunpack.c.l.s4 1983009808
    %v599 = vunpack.c.0.s8 %v598
    %v600 = vlaneseq
    %v601 = vshrl.u32 %v600, 7
    %v602 = vsub.s32 %v599, %v601
    %v603 = vrot.slane %v589, %v602
    %v604 = vcombine.high %v596, 0
    %v606 = vunpack.c.l.s4 1934713408
    %v607 = vunpack.c.0.s8 %v606
    %v608 = vlaneseq
    %v609 = vshrl.u32 %v608, 7
    %v610 = vsub.s32 %v607, %v609
    %v611 = vrot.slane %v596, %v610
    %v613 = vunpack.c.l.s4 1934713408
    %v614 = vunpack.c.0.s8 %v613
    %v615 = vlaneseq
    %v616 = vshrl.u32 %v615, 7
    %v617 = vsub.s32 %v614, %v616
    %v618 = vrot.slane %v604, %v617
    %v619 = vcombine.high %v603, 0
    %v621 = vunpack.c.l.s4 1934713408
    %v622 = vunpack.c.0.s8 %v621
    %v623 = vlaneseq
    %v624 = vshrl.u32 %v623, 7
    %v625 = vsub.s32 %v622, %v624
    %v626 = vrot.slane %v603, %v625
    %v628 = vunpack.c.l.s4 1934713408
    %v629 = vunpack.c.0.s8 %v628
    %v630 = vlaneseq
    %v631 = vshrl.u32 %v630, 7
    %v632 = vsub.s32 %v629, %v631
    %v633 = vrot.slane %v619, %v632
    %v634 = vcombine.high %v611, 0
    %v635 = vcombine.high %v618, 0
    %v636 = vcombine.high %v626, 0
    %v637 = vcombine.high %v633, 0
    %v638 = vcombine.high %v587, %v365
    %v640 = vunpack.c.l.s4 1983009808
    %v641 = vunpack.c.0.s8 %v640
    %v642 = vlaneseq
    %v643 = vshrl.u32 %v642, 7
    %v644 = vsub.s32 %v641, %v643
    %v645 = vrot.slane %v587, %v644
    %v647 = vunpack.c.l.s4 1983009808
    %v648 = vunpack.c.0.s8 %v647
    %v649 = vlaneseq
    %v650 = vshrl.u32 %v649, 7
    %v651 = vsub.s32 %v648, %v650
    %v652 = vrot.slane %v638, %v651
    %v653 = vcombine.high %v645, 0
    %v655 = vunpack.c.l.s4 1934713408
    %v656 = vunpack.c.0.s8 %v655
    %v657 = vlaneseq
    %v658 = vshrl.u32 %v657, 7
    %v659 = vsub.s32 %v656, %v658
    %v660 = vrot.slane %v645, %v659
    %v662 = vunpack.c.l.s4 1934713408
    %v663 = vunpack.c.0.s8 %v662
    %v664 = vlaneseq
    %v665 = vshrl.u32 %v664, 7
    %v666 = vsub.s32 %v663, %v665
    %v667 = vrot.slane %v653, %v666
    %v668 = vcombine.high %v652, 0
    %v670 = vunpack.c.l.s4 1934713408
    %v671 = vunpack.c.0.s8 %v670
    %v672 = vlaneseq
    %v673 = vshrl.u32 %v672, 7
    %v674 = vsub.s32 %v671, %v673
    %v675 = vrot.slane %v652, %v674
    %v677 = vunpack.c.l.s4 1934713408
    %v678 = vunpack.c.0.s8 %v677
    %v679 = vlaneseq
    %v680 = vshrl.u32 %v679, 7
    %v681 = vsub.s32 %v678, %v680
    %v682 = vrot.slane %v668, %v681
    %v683 = vcombine.high %v660, 0
    %v684 = vcombine.high %v667, 0
    %v685 = vcombine.high %v675, 0
    %v686 = vcombine.high %v682, 0
    %v687 = vcombine.low %v611, %v618
    %v689 = vunpack.c.l.s4 1983009808
    %v690 = vunpack.c.0.s8 %v689
    %v691 = vlaneseq
    %v692 = vshrl.u32 %v691, 7
    %v693 = vsub.s32 %v690, %v692
    %v694 = vrot.slane %v687, %v693
    %v695 = vcombine.low %v634, %v635
    %v697 = vunpack.c.l.s4 1983009808
    %v698 = vunpack.c.0.s8 %v697
    %v699 = vlaneseq
    %v700 = vshrl.u32 %v699, 7
    %v701 = vsub.s32 %v698, %v700
    %v702 = vrot.slane %v695, %v701
    %v703 = vcombine.low %v626, %v633
    %v705 = vunpack.c.l.s4 1983009808
    %v706 = vunpack.c.0.s8 %v705
    %v707 = vlaneseq
    %v708 = vshrl.u32 %v707, 7
    %v709 = vsub.s32 %v706, %v708
    %v710 = vrot.slane %v703, %v709
    %v711 = vcombine.low %v636, %v637
    %v713 = vunpack.c.l.s4 1983009808
    %v714 = vunpack.c.0.s8 %v713
    %v715 = vlaneseq
    %v716 = vshrl.u32 %v715, 7
    %v717 = vsub.s32 %v714, %v716
    %v718 = vrot.slane %v711, %v717
    %v719 = vcombine.low %v694, %v702
    %v721 = vunpack.c.l.s4 1934713408
    %v722 = vunpack.c.0.s8 %v721
    %v723 = vlaneseq
    %v724 = vshrl.u32 %v723, 7
    %v725 = vsub.s32 %v722, %v724
    %v726 = vrot.slane %v719, %v725
    %v727 = vcombine.low %v710, %v718
    %v729 = vunpack.c.l.s4 1934713408
    %v730 = vunpack.c.0.s8 %v729
    %v731 = vlaneseq
    %v732 = vshrl.u32 %v731, 7
    %v733 = vsub.s32 %v730, %v732
    %v734 = vrot.slane %v727, %v733
    %v735 = vcombine.low %v726, %v734
    %v736 = vcombine.low %v660, %v667
    %v738 = vunpack.c.l.s4 1983009808
    %v739 = vunpack.c.0.s8 %v738
    %v740 = vlaneseq
    %v741 = vshrl.u32 %v740, 7
    %v742 = vsub.s32 %v739, %v741
    %v743 = vrot.slane %v736, %v742
    %v744 = vcombine.low %v683, %v684
    %v746 = vunpack.c.l.s4 1983009808
    %v747 = vunpack.c.0.s8 %v746
    %v748 = vlaneseq
    %v749 = vshrl.u32 %v748, 7
    %v750 = vsub.s32 %v747, %v749
    %v751 = vrot.slane %v744, %v750
    %v752 = vcombine.low %v675, %v682
    %v754 = vunpack.c.l.s4 1983009808
    %v755 = vunpack.c.0.s8 %v754
    %v756 = vlaneseq
    %v757 = vshrl.u32 %v756, 7
    %v758 = vsub.s32 %v755, %v757
    %v759 = vrot.slane %v752, %v758
    %v760 = vcombine.low %v685, %v686
    %v762 = vunpack.c.l.s4 1983009808
    %v763 = vunpack.c.0.s8 %v762
    %v764 = vlaneseq
    %v765 = vshrl.u32 %v764, 7
    %v766 = vsub.s32 %v763, %v765
    %v767 = vrot.slane %v760, %v766
    %v768 = vcombine.low %v743, %v751
    %v770 = vunpack.c.l.s4 1934713408
    %v771 = vunpack.c.0.s8 %v770
    %v772 = vlaneseq
    %v773 = vshrl.u32 %v772, 7
    %v774 = vsub.s32 %v771, %v773
    %v775 = vrot.slane %v768, %v774
    %v776 = vcombine.low %v759, %v767
    %v778 = vunpack.c.l.s4 1934713408
    %v779 = vunpack.c.0.s8 %v778
    %v780 = vlaneseq
    %v781 = vshrl.u32 %v780, 7
    %v782 = vsub.s32 %v779, %v781
    %v783 = vrot.slane %v776, %v782
    %v784 = vcombine.low %v775, %v783
    %v787 = vpack.i.b16 %v784, %v735
    %v788 = vshrl.u32 %v735, 16
    %v789 = vshrl.u32 %v784, 16
    %v790 = vpack.i.b16 %v789, %v788
    %v791 = vunpack.c.l.b16 %v787
    %v792 = vunpack.c.h.b16 %v787
    %v793 = vunpack.c.l.b16 %v790
    %v794 = vunpack.c.h.b16 %v790
    %v795 = vpack.c.b16 %v791, %v791
    %v796 = vpack.c.b16 %v792, %v792
    %v797 = vpack.c.b16 %v793, %v793
    %v798 = vpack.c.b16 %v794, %v794
    %v799 = vpack.c.bf16 %v348, %v347
    %801 = vrot.lane.b32.xlu0 %v799, 112
    %v802 = vpop.permute.xlu0 %801
    %v805 = vpack.i.b16 %v802, %v799
    %v807 = vshrl.u32 %v799, 16
    %v808 = vshrl.u32 %v802, 16
    %v809 = vpack.i.b16 %v808, %v807
    %v811 = vcombine.high %v805, %v362
    %v813 = vunpack.c.l.s4 1983009808
    %v814 = vunpack.c.0.s8 %v813
    %v815 = vlaneseq
    %v816 = vshrl.u32 %v815, 7
    %v817 = vsub.s32 %v814, %v816
    %v818 = vrot.slane %v805, %v817
    %v820 = vunpack.c.l.s4 1983009808
    %v821 = vunpack.c.0.s8 %v820
    %v822 = vlaneseq
    %v823 = vshrl.u32 %v822, 7
    %v824 = vsub.s32 %v821, %v823
    %v825 = vrot.slane %v811, %v824
    %v826 = vcombine.high %v818, 0
    %v828 = vunpack.c.l.s4 1934713408
    %v829 = vunpack.c.0.s8 %v828
    %v830 = vlaneseq
    %v831 = vshrl.u32 %v830, 7
    %v832 = vsub.s32 %v829, %v831
    %v833 = vrot.slane %v818, %v832
    %v835 = vunpack.c.l.s4 1934713408
    %v836 = vunpack.c.0.s8 %v835
    %v837 = vlaneseq
    %v838 = vshrl.u32 %v837, 7
    %v839 = vsub.s32 %v836, %v838
    %v840 = vrot.slane %v826, %v839
    %v841 = vcombine.high %v825, 0
    %v843 = vunpack.c.l.s4 1934713408
    %v844 = vunpack.c.0.s8 %v843
    %v845 = vlaneseq
    %v846 = vshrl.u32 %v845, 7
    %v847 = vsub.s32 %v844, %v846
    %v848 = vrot.slane %v825, %v847
    %v850 = vunpack.c.l.s4 1934713408
    %v851 = vunpack.c.0.s8 %v850
    %v852 = vlaneseq
    %v853 = vshrl.u32 %v852, 7
    %v854 = vsub.s32 %v851, %v853
    %v855 = vrot.slane %v841, %v854
    %v856 = vcombine.high %v833, 0
    %v857 = vcombine.high %v840, 0
    %v858 = vcombine.high %v848, 0
    %v859 = vcombine.high %v855, 0
    %v860 = vcombine.high %v809, %v365
    %v862 = vunpack.c.l.s4 1983009808
    %v863 = vunpack.c.0.s8 %v862
    %v864 = vlaneseq
    %v865 = vshrl.u32 %v864, 7
    %v866 = vsub.s32 %v863, %v865
    %v867 = vrot.slane %v809, %v866
    %v869 = vunpack.c.l.s4 1983009808
    %v870 = vunpack.c.0.s8 %v869
    %v871 = vlaneseq
    %v872 = vshrl.u32 %v871, 7
    %v873 = vsub.s32 %v870, %v872
    %v874 = vrot.slane %v860, %v873
    %v875 = vcombine.high %v867, 0
    %v877 = vunpack.c.l.s4 1934713408
    %v878 = vunpack.c.0.s8 %v877
    %v879 = vlaneseq
    %v880 = vshrl.u32 %v879, 7
    %v881 = vsub.s32 %v878, %v880
    %v882 = vrot.slane %v867, %v881
    %v884 = vunpack.c.l.s4 1934713408
    %v885 = vunpack.c.0.s8 %v884
    %v886 = vlaneseq
    %v887 = vshrl.u32 %v886, 7
    %v888 = vsub.s32 %v885, %v887
    %v889 = vrot.slane %v875, %v888
    %v890 = vcombine.high %v874, 0
    %v892 = vunpack.c.l.s4 1934713408
    %v893 = vunpack.c.0.s8 %v892
    %v894 = vlaneseq
    %v895 = vshrl.u32 %v894, 7
    %v896 = vsub.s32 %v893, %v895
    %v897 = vrot.slane %v874, %v896
    %v899 = vunpack.c.l.s4 1934713408
    %v900 = vunpack.c.0.s8 %v899
    %v901 = vlaneseq
    %v902 = vshrl.u32 %v901, 7
    %v903 = vsub.s32 %v900, %v902
    %v904 = vrot.slane %v890, %v903
    %v905 = vcombine.high %v882, 0
    %v906 = vcombine.high %v889, 0
    %v907 = vcombine.high %v897, 0
    %v908 = vcombine.high %v904, 0
    %v909 = vcombine.low %v833, %v840
    %v911 = vunpack.c.l.s4 1983009808
    %v912 = vunpack.c.0.s8 %v911
    %v913 = vlaneseq
    %v914 = vshrl.u32 %v913, 7
    %v915 = vsub.s32 %v912, %v914
    %v916 = vrot.slane %v909, %v915
    %v917 = vcombine.low %v856, %v857
    %v919 = vunpack.c.l.s4 1983009808
    %v920 = vunpack.c.0.s8 %v919
    %v921 = vlaneseq
    %v922 = vshrl.u32 %v921, 7
    %v923 = vsub.s32 %v920, %v922
    %v924 = vrot.slane %v917, %v923
    %v925 = vcombine.low %v848, %v855
    %v927 = vunpack.c.l.s4 1983009808
    %v928 = vunpack.c.0.s8 %v927
    %v929 = vlaneseq
    %v930 = vshrl.u32 %v929, 7
    %v931 = vsub.s32 %v928, %v930
    %v932 = vrot.slane %v925, %v931
    %v933 = vcombine.low %v858, %v859
    %v935 = vunpack.c.l.s4 1983009808
    %v936 = vunpack.c.0.s8 %v935
    %v937 = vlaneseq
    %v938 = vshrl.u32 %v937, 7
    %v939 = vsub.s32 %v936, %v938
    %v940 = vrot.slane %v933, %v939
    %v941 = vcombine.low %v916, %v924
    %v943 = vunpack.c.l.s4 1934713408
    %v944 = vunpack.c.0.s8 %v943
    %v945 = vlaneseq
    %v946 = vshrl.u32 %v945, 7
    %v947 = vsub.s32 %v944, %v946
    %v948 = vrot.slane %v941, %v947
    %v949 = vcombine.low %v932, %v940
    %v951 = vunpack.c.l.s4 1934713408
    %v952 = vunpack.c.0.s8 %v951
    %v953 = vlaneseq
    %v954 = vshrl.u32 %v953, 7
    %v955 = vsub.s32 %v952, %v954
    %v956 = vrot.slane %v949, %v955
    %v957 = vcombine.low %v948, %v956
    %v958 = vcombine.low %v882, %v889
    %v960 = vunpack.c.l.s4 1983009808
    %v961 = vunpack.c.0.s8 %v960
    %v962 = vlaneseq
    %v963 = vshrl.u32 %v962, 7
    %v964 = vsub.s32 %v961, %v963
    %v965 = vrot.slane %v958, %v964
    %v966 = vcombine.low %v905, %v906
    %v968 = vunpack.c.l.s4 1983009808
    %v969 = vunpack.c.0.s8 %v968
    %v970 = vlaneseq
    %v971 = vshrl.u32 %v970, 7
    %v972 = vsub.s32 %v969, %v971
    %v973 = vrot.slane %v966, %v972
    %v974 = vcombine.low %v897, %v904
    %v976 = vunpack.c.l.s4 1983009808
    %v977 = vunpack.c.0.s8 %v976
    %v978 = vlaneseq
    %v979 = vshrl.u32 %v978, 7
    %v980 = vsub.s32 %v977, %v979
    %v981 = vrot.slane %v974, %v980
    %v982 = vcombine.low %v907, %v908
    %v984 = vunpack.c.l.s4 1983009808
    %v985 = vunpack.c.0.s8 %v984
    %v986 = vlaneseq
    %v987 = vshrl.u32 %v986, 7
    %v988 = vsub.s32 %v985, %v987
    %v989 = vrot.slane %v982, %v988
    %v990 = vcombine.low %v965, %v973
    %v992 = vunpack.c.l.s4 1934713408
    %v993 = vunpack.c.0.s8 %v992
    %v994 = vlaneseq
    %v995 = vshrl.u32 %v994, 7
    %v996 = vsub.s32 %v993, %v995
    %v997 = vrot.slane %v990, %v996
    %v998 = vcombine.low %v981, %v989
    %v1000 = vunpack.c.l.s4 1934713408
    %v1001 = vunpack.c.0.s8 %v1000
    %v1002 = vlaneseq
    %v1003 = vshrl.u32 %v1002, 7
    %v1004 = vsub.s32 %v1001, %v1003
    %v1005 = vrot.slane %v998, %v1004
    %v1006 = vcombine.low %v997, %v1005
    %v1009 = vpack.i.b16 %v1006, %v957
    %v1010 = vshrl.u32 %v957, 16
    %v1011 = vshrl.u32 %v1006, 16
    %v1012 = vpack.i.b16 %v1011, %v1010
    %v1013 = vunpack.c.l.b16 %v1009
    %v1014 = vunpack.c.h.b16 %v1009
    %v1015 = vunpack.c.l.b16 %v1012
    %v1016 = vunpack.c.h.b16 %v1012
    %v1017 = vpack.c.b16 %v1013, %v1013
    %v1018 = vpack.c.b16 %v1014, %v1014
    %v1019 = vpack.c.b16 %v1015, %v1015
    %v1020 = vpack.c.b16 %v1016, %v1016
    %v1021 = vlaneseq
    %v1022 = vshrl.u32 %v1021, 7
    %v1023 = vlaneseq
    %v1024 = vand.u32 %v1023, 127
    %vm1025 = vcmp.le.s32.totalorder %v1024, %v1022
    %vm1026 = vcmask 130048
    %v1028 = vsel %vm1026, %v573, 0
    %v1031 = vsel %vm1026, %v795, 0
    %1033 = vmatprep.subr.bf16.mxu0 0
    %1034 = vmatpush1.bf16.xpose.msra.mxu0 0
    %1035 = vmatprep.subr.bf16.mxu0 0
    %1036 = vmatpush1.bf16.xpose.msra.mxu0 0
    %1037 = vmatprep.subr.bf16.mxu0 0
    %1038 = vmatpush1.bf16.xpose.msra.mxu0 0
    %1039 = vmatprep.subr.bf16.mxu0 0
    %1040 = vmatpush1.bf16.xpose.msra.mxu0 0
    %1041 = vmatprep.subr.bf16.mxu0 0
    %1042 = vmatpush1.bf16.xpose.msra.mxu0 0
    %1043 = vmatprep.subr.bf16.mxu0 0
    %1044 = vmatpush1.bf16.xpose.msra.mxu0 0
    %1045 = vmatprep.subr.bf16.mxu0 0
    %1046 = vmatpush1.bf16.xpose.msra.mxu0 0
    %1047 = vmatprep.subr.bf16.mxu0 0
    %1048 = vmatpush1.bf16.xpose.msra.mxu0 %v1031
    %1049 = vmatprep.subr.bf16.mxu0 0
    %1050 = vmatpush2.bf16.xpose.msra.mxu0 0
    %1051 = vmatprep.subr.bf16.mxu0 0
    %1052 = vmatpush2.bf16.xpose.msra.mxu0 0
    %1053 = vmatprep.subr.bf16.mxu0 0
    %1054 = vmatpush2.bf16.xpose.msra.mxu0 0
    %1055 = vmatprep.subr.bf16.mxu0 0
    %1056 = vmatpush2.bf16.xpose.msra.mxu0 0
    %1057 = vmatprep.subr.bf16.mxu0 0
    %1058 = vmatpush2.bf16.xpose.msra.mxu0 0
    %1059 = vmatprep.subr.bf16.mxu0 0
    %1060 = vmatpush2.bf16.xpose.msra.mxu0 0
    %1061 = vmatprep.subr.bf16.mxu0 0
    %1062 = vmatpush2.bf16.xpose.msra.mxu0 0
    %1063 = vmatprep.subr.bf16.mxu0 0
    %1064 = vmatpush2.bf16.xpose.msra.mxu0 0
    %1065 = vmatprep.mubr.bf16.mxu0 0
    %1066 = vmatmul.mubr.bf16.gmra.mxu0 %v1028
    %v1067 = vpop.f32.mrf.mxu0
    %v1068 = vadd.f32 0.0, %v1067
    %v1069 = vpop.f32.mrf.mxu0
    %v1070 = vpop.f32.mrf.mxu0
    %v1071 = vpop.f32.mrf.mxu0
    %1072 = vdwg.mxu0
    %v1074 = vsel %vm1026, %v574, 0
    %v1077 = vsel %vm1026, %v796, 0
    %1079 = vmatprep.subr.bf16.mxu0 0
    %1080 = vmatpush1.bf16.xpose.msra.mxu0 0
    %1081 = vmatprep.subr.bf16.mxu0 0
    %1082 = vmatpush1.bf16.xpose.msra.mxu0 0
    %1083 = vmatprep.subr.bf16.mxu0 0
    %1084 = vmatpush1.bf16.xpose.msra.mxu0 0
    %1085 = vmatprep.subr.bf16.mxu0 0
    %1086 = vmatpush1.bf16.xpose.msra.mxu0 0
    %1087 = vmatprep.subr.bf16.mxu0 0
    %1088 = vmatpush1.bf16.xpose.msra.mxu0 0
    %1089 = vmatprep.subr.bf16.mxu0 0
    %1090 = vmatpush1.bf16.xpose.msra.mxu0 0
    %1091 = vmatprep.subr.bf16.mxu0 0
    %1092 = vmatpush1.bf16.xpose.msra.mxu0 0
    %1093 = vmatprep.subr.bf16.mxu0 0
    %1094 = vmatpush1.bf16.xpose.msra.mxu0 %v1077
    %1095 = vmatprep.subr.bf16.mxu0 0
    %1096 = vmatpush2.bf16.xpose.msra.mxu0 0
    %1097 = vmatprep.subr.bf16.mxu0 0
    %1098 = vmatpush2.bf16.xpose.msra.mxu0 0
    %1099 = vmatprep.subr.bf16.mxu0 0
    %1100 = vmatpush2.bf16.xpose.msra.mxu0 0
    %1101 = vmatprep.subr.bf16.mxu0 0
    %1102 = vmatpush2.bf16.xpose.msra.mxu0 0
    %1103 = vmatprep.subr.bf16.mxu0 0
    %1104 = vmatpush2.bf16.xpose.msra.mxu0 0
    %1105 = vmatprep.subr.bf16.mxu0 0
    %1106 = vmatpush2.bf16.xpose.msra.mxu0 0
    %1107 = vmatprep.subr.bf16.mxu0 0
    %1108 = vmatpush2.bf16.xpose.msra.mxu0 0
    %1109 = vmatprep.subr.bf16.mxu0 0
    %1110 = vmatpush2.bf16.xpose.msra.mxu0 0
    %1111 = vmatprep.mubr.bf16.mxu0 0
    %1112 = vmatmul.mubr.bf16.gmra.mxu0 %v1074
    %v1113 = vpop.f32.mrf.mxu0
    %v1114 = vadd.f32 0.0, %v1113
    %v1115 = vpop.f32.mrf.mxu0
    %v1116 = vpop.f32.mrf.mxu0
    %v1117 = vpop.f32.mrf.mxu0
    %1118 = vdwg.mxu0
    %v1120 = vsel %vm1026, %v575, 0
    %v1123 = vsel %vm1026, %v797, 0
    %1125 = vmatprep.subr.bf16.mxu0 0
    %1126 = vmatpush1.bf16.xpose.msra.mxu0 0
    %1127 = vmatprep.subr.bf16.mxu0 0
    %1128 = vmatpush1.bf16.xpose.msra.mxu0 0
    %1129 = vmatprep.subr.bf16.mxu0 0
    %1130 = vmatpush1.bf16.xpose.msra.mxu0 0
    %1131 = vmatprep.subr.bf16.mxu0 0
    %1132 = vmatpush1.bf16.xpose.msra.mxu0 0
    %1133 = vmatprep.subr.bf16.mxu0 0
    %1134 = vmatpush1.bf16.xpose.msra.mxu0 0
    %1135 = vmatprep.subr.bf16.mxu0 0
    %1136 = vmatpush1.bf16.xpose.msra.mxu0 0
    %1137 = vmatprep.subr.bf16.mxu0 0
    %1138 = vmatpush1.bf16.xpose.msra.mxu0 0
    %1139 = vmatprep.subr.bf16.mxu0 0
    %1140 = vmatpush1.bf16.xpose.msra.mxu0 %v1123
    %1141 = vmatprep.subr.bf16.mxu0 0
    %1142 = vmatpush2.bf16.xpose.msra.mxu0 0
    %1143 = vmatprep.subr.bf16.mxu0 0
    %1144 = vmatpush2.bf16.xpose.msra.mxu0 0
    %1145 = vmatprep.subr.bf16.mxu0 0
    %1146 = vmatpush2.bf16.xpose.msra.mxu0 0
    %1147 = vmatprep.subr.bf16.mxu0 0
    %1148 = vmatpush2.bf16.xpose.msra.mxu0 0
    %1149 = vmatprep.subr.bf16.mxu0 0
    %1150 = vmatpush2.bf16.xpose.msra.mxu0 0
    %1151 = vmatprep.subr.bf16.mxu0 0
    %1152 = vmatpush2.bf16.xpose.msra.mxu0 0
    %1153 = vmatprep.subr.bf16.mxu0 0
    %1154 = vmatpush2.bf16.xpose.msra.mxu0 0
    %1155 = vmatprep.subr.bf16.mxu0 0
    %1156 = vmatpush2.bf16.xpose.msra.mxu0 0
    %1157 = vmatprep.mubr.bf16.mxu0 0
    %1158 = vmatmul.mubr.bf16.gmra.mxu0 %v1120
    %v1159 = vpop.f32.mrf.mxu0
    %v1160 = vadd.f32 0.0, %v1159
    %v1161 = vpop.f32.mrf.mxu0
    %v1162 = vpop.f32.mrf.mxu0
    %v1163 = vpop.f32.mrf.mxu0
    %1164 = vdwg.mxu0
    %v1166 = vsel %vm1026, %v576, 0
    %v1169 = vsel %vm1026, %v798, 0
    %1171 = vmatprep.subr.bf16.mxu0 0
    %1172 = vmatpush1.bf16.xpose.msra.mxu0 0
    %1173 = vmatprep.subr.bf16.mxu0 0
    %1174 = vmatpush1.bf16.xpose.msra.mxu0 0
    %1175 = vmatprep.subr.bf16.mxu0 0
    %1176 = vmatpush1.bf16.xpose.msra.mxu0 0
    %1177 = vmatprep.subr.bf16.mxu0 0
    %1178 = vmatpush1.bf16.xpose.msra.mxu0 0
    %1179 = vmatprep.subr.bf16.mxu0 0
    %1180 = vmatpush1.bf16.xpose.msra.mxu0 0
    %1181 = vmatprep.subr.bf16.mxu0 0
    %1182 = vmatpush1.bf16.xpose.msra.mxu0 0
    %1183 = vmatprep.subr.bf16.mxu0 0
    %1184 = vmatpush1.bf16.xpose.msra.mxu0 0
    %1185 = vmatprep.subr.bf16.mxu0 0
    %1186 = vmatpush1.bf16.xpose.msra.mxu0 %v1169
    %1187 = vmatprep.subr.bf16.mxu0 0
    %1188 = vmatpush2.bf16.xpose.msra.mxu0 0
    %1189 = vmatprep.subr.bf16.mxu0 0
    %1190 = vmatpush2.bf16.xpose.msra.mxu0 0
    %1191 = vmatprep.subr.bf16.mxu0 0
    %1192 = vmatpush2.bf16.xpose.msra.mxu0 0
    %1193 = vmatprep.subr.bf16.mxu0 0
    %1194 = vmatpush2.bf16.xpose.msra.mxu0 0
    %1195 = vmatprep.subr.bf16.mxu0 0
    %1196 = vmatpush2.bf16.xpose.msra.mxu0 0
    %1197 = vmatprep.subr.bf16.mxu0 0
    %1198 = vmatpush2.bf16.xpose.msra.mxu0 0
    %1199 = vmatprep.subr.bf16.mxu0 0
    %1200 = vmatpush2.bf16.xpose.msra.mxu0 0
    %1201 = vmatprep.subr.bf16.mxu0 0
    %1202 = vmatpush2.bf16.xpose.msra.mxu0 0
    %1203 = vmatprep.mubr.bf16.mxu0 0
    %1204 = vmatmul.mubr.bf16.gmra.mxu0 %v1166
    %v1205 = vpop.f32.mrf.mxu0
    %v1206 = vadd.f32 0.0, %v1205
    %v1207 = vpop.f32.mrf.mxu0
    %v1208 = vpop.f32.mrf.mxu0
    %v1209 = vpop.f32.mrf.mxu0
    %1210 = vdwg.mxu0
    %v1211 = vmax.f32 %v1068, 0.0
    %v1212 = vmax.f32 %v1114, 0.0
    %v1213 = vmax.f32 %v1160, 0.0
    %v1214 = vmax.f32 %v1206, 0.0
    %v1215 = vsel %vm1025, 1, 0
    %vm1216 = vcmp.eq.s32.totalorder %v1215, 1
    %v1217 = vsel %vm1216, %v1211, 0.0
    %v1218 = vsel %vm1216, %v1212, 0.0
    %v1219 = vsel %vm1216, %v1213, 0.0
    %v1220 = vsel %vm1216, %v1214, 0.0
    %v1221 = vpack.c.bf16 %v1217, %v1217
    %v1222 = vpack.c.bf16 %v1218, %v1218
    %v1223 = vpack.c.bf16 %v1219, %v1219
    %v1224 = vpack.c.bf16 %v1220, %v1220
    %vm1225 = vcmask 64512
    %v1227 = vsel %vm1225, %v1221, 0
    %vm1229 = vcmask 1043456
    %v1231 = vsel %vm1229, %v1017, 0
    %1233 = vmatprep.subr.bf16.mxu0 0
    %1234 = vmatpush1.bf16.msra.mxu0 0
    %1235 = vmatprep.subr.bf16.mxu0 0
    %1236 = vmatpush1.bf16.msra.mxu0 0
    %1237 = vmatprep.subr.bf16.mxu0 0
    %1238 = vmatpush1.bf16.msra.mxu0 0
    %1239 = vmatprep.subr.bf16.mxu0 0
    %1240 = vmatpush1.bf16.msra.mxu0 0
    %1241 = vmatprep.subr.bf16.mxu0 0
    %1242 = vmatpush1.bf16.msra.mxu0 0
    %1243 = vmatprep.subr.bf16.mxu0 0
    %1244 = vmatpush1.bf16.msra.mxu0 0
    %1245 = vmatprep.subr.bf16.mxu0 0
    %1246 = vmatpush1.bf16.msra.mxu0 0
    %1247 = vmatprep.subr.bf16.mxu0 0
    %1248 = vmatpush1.bf16.msra.mxu0 %v1231
    %1249 = vmatprep.subr.bf16.mxu0 0
    %1250 = vmatpush2.bf16.msra.mxu0 0
    %1251 = vmatprep.subr.bf16.mxu0 0
    %1252 = vmatpush2.bf16.msra.mxu0 0
    %1253 = vmatprep.subr.bf16.mxu0 0
    %1254 = vmatpush2.bf16.msra.mxu0 0
    %1255 = vmatprep.subr.bf16.mxu0 0
    %1256 = vmatpush2.bf16.msra.mxu0 0
    %1257 = vmatprep.subr.bf16.mxu0 0
    %1258 = vmatpush2.bf16.msra.mxu0 0
    %1259 = vmatprep.subr.bf16.mxu0 0
    %1260 = vmatpush2.bf16.msra.mxu0 0
    %1261 = vmatprep.subr.bf16.mxu0 0
    %1262 = vmatpush2.bf16.msra.mxu0 0
    %1263 = vmatprep.subr.bf16.mxu0 0
    %1264 = vmatpush2.bf16.msra.mxu0 0
    %1265 = vmatprep.mubr.bf16.mxu0 0
    %1266 = vmatmul.mubr.bf16.gmra.mxu0 %v1227
    %v1267 = vpop.f32.mrf.mxu0
    %v1268 = vadd.f32 0.0, %v1267
    %v1269 = vpop.f32.mrf.mxu0
    %v1270 = vpop.f32.mrf.mxu0
    %v1271 = vpop.f32.mrf.mxu0
    %1272 = vdwg.mxu0
    %v1274 = vsel %vm1225, %v1222, 0
    %v1277 = vsel %vm1229, %v1018, 0
    %1279 = vmatprep.subr.bf16.mxu0 0
    %1280 = vmatpush1.bf16.msra.mxu0 0
    %1281 = vmatprep.subr.bf16.mxu0 0
    %1282 = vmatpush1.bf16.msra.mxu0 0
    %1283 = vmatprep.subr.bf16.mxu0 0
    %1284 = vmatpush1.bf16.msra.mxu0 0
    %1285 = vmatprep.subr.bf16.mxu0 0
    %1286 = vmatpush1.bf16.msra.mxu0 0
    %1287 = vmatprep.subr.bf16.mxu0 0
    %1288 = vmatpush1.bf16.msra.mxu0 0
    %1289 = vmatprep.subr.bf16.mxu0 0
    %1290 = vmatpush1.bf16.msra.mxu0 0
    %1291 = vmatprep.subr.bf16.mxu0 0
    %1292 = vmatpush1.bf16.msra.mxu0 0
    %1293 = vmatprep.subr.bf16.mxu0 0
    %1294 = vmatpush1.bf16.msra.mxu0 %v1277
    %1295 = vmatprep.subr.bf16.mxu0 0
    %1296 = vmatpush2.bf16.msra.mxu0 0
    %1297 = vmatprep.subr.bf16.mxu0 0
    %1298 = vmatpush2.bf16.msra.mxu0 0
    %1299 = vmatprep.subr.bf16.mxu0 0
    %1300 = vmatpush2.bf16.msra.mxu0 0
    %1301 = vmatprep.subr.bf16.mxu0 0
    %1302 = vmatpush2.bf16.msra.mxu0 0
    %1303 = vmatprep.subr.bf16.mxu0 0
    %1304 = vmatpush2.bf16.msra.mxu0 0
    %1305 = vmatprep.subr.bf16.mxu0 0
    %1306 = vmatpush2.bf16.msra.mxu0 0
    %1307 = vmatprep.subr.bf16.mxu0 0
    %1308 = vmatpush2.bf16.msra.mxu0 0
    %1309 = vmatprep.subr.bf16.mxu0 0
    %1310 = vmatpush2.bf16.msra.mxu0 0
    %1311 = vmatprep.mubr.bf16.mxu0 0
    %1312 = vmatmul.mubr.bf16.gmra.mxu0 %v1274
    %v1313 = vpop.f32.mrf.mxu0
    %v1314 = vadd.f32 0.0, %v1313
    %v1315 = vpop.f32.mrf.mxu0
    %v1316 = vpop.f32.mrf.mxu0
    %v1317 = vpop.f32.mrf.mxu0
    %1318 = vdwg.mxu0
    %v1320 = vsel %vm1225, %v1223, 0
    %v1323 = vsel %vm1229, %v1019, 0
    %1325 = vmatprep.subr.bf16.mxu0 0
    %1326 = vmatpush1.bf16.msra.mxu0 0
    %1327 = vmatprep.subr.bf16.mxu0 0
    %1328 = vmatpush1.bf16.msra.mxu0 0
    %1329 = vmatprep.subr.bf16.mxu0 0
    %1330 = vmatpush1.bf16.msra.mxu0 0
    %1331 = vmatprep.subr.bf16.mxu0 0
    %1332 = vmatpush1.bf16.msra.mxu0 0
    %1333 = vmatprep.subr.bf16.mxu0 0
    %1334 = vmatpush1.bf16.msra.mxu0 0
    %1335 = vmatprep.subr.bf16.mxu0 0
    %1336 = vmatpush1.bf16.msra.mxu0 0
    %1337 = vmatprep.subr.bf16.mxu0 0
    %1338 = vmatpush1.bf16.msra.mxu0 0
    %1339 = vmatprep.subr.bf16.mxu0 0
    %1340 = vmatpush1.bf16.msra.mxu0 %v1323
    %1341 = vmatprep.subr.bf16.mxu0 0
    %1342 = vmatpush2.bf16.msra.mxu0 0
    %1343 = vmatprep.subr.bf16.mxu0 0
    %1344 = vmatpush2.bf16.msra.mxu0 0
    %1345 = vmatprep.subr.bf16.mxu0 0
    %1346 = vmatpush2.bf16.msra.mxu0 0
    %1347 = vmatprep.subr.bf16.mxu0 0
    %1348 = vmatpush2.bf16.msra.mxu0 0
    %1349 = vmatprep.subr.bf16.mxu0 0
    %1350 = vmatpush2.bf16.msra.mxu0 0
    %1351 = vmatprep.subr.bf16.mxu0 0
    %1352 = vmatpush2.bf16.msra.mxu0 0
    %1353 = vmatprep.subr.bf16.mxu0 0
    %1354 = vmatpush2.bf16.msra.mxu0 0
    %1355 = vmatprep.subr.bf16.mxu0 0
    %1356 = vmatpush2.bf16.msra.mxu0 0
    %1357 = vmatprep.mubr.bf16.mxu0 0
    %1358 = vmatmul.mubr.bf16.gmra.mxu0 %v1320
    %v1359 = vpop.f32.mrf.mxu0
    %v1360 = vadd.f32 0.0, %v1359
    %v1361 = vpop.f32.mrf.mxu0
    %v1362 = vpop.f32.mrf.mxu0
    %v1363 = vpop.f32.mrf.mxu0
    %1364 = vdwg.mxu0
    %v1366 = vsel %vm1225, %v1224, 0
    %v1369 = vsel %vm1229, %v1020, 0
    %1371 = vmatprep.subr.bf16.mxu0 0
    %1372 = vmatpush1.bf16.msra.mxu0 0
    %1373 = vmatprep.subr.bf16.mxu0 0
    %1374 = vmatpush1.bf16.msra.mxu0 0
    %1375 = vmatprep.subr.bf16.mxu0 0
    %1376 = vmatpush1.bf16.msra.mxu0 0
    %1377 = vmatprep.subr.bf16.mxu0 0
    %1378 = vmatpush1.bf16.msra.mxu0 0
    %1379 = vmatprep.subr.bf16.mxu0 0
    %1380 = vmatpush1.bf16.msra.mxu0 0
    %1381 = vmatprep.subr.bf16.mxu0 0
    %1382 = vmatpush1.bf16.msra.mxu0 0
    %1383 = vmatprep.subr.bf16.mxu0 0
    %1384 = vmatpush1.bf16.msra.mxu0 0
    %1385 = vmatprep.subr.bf16.mxu0 0
    %1386 = vmatpush1.bf16.msra.mxu0 %v1369
    %1387 = vmatprep.subr.bf16.mxu0 0
    %1388 = vmatpush2.bf16.msra.mxu0 0
    %1389 = vmatprep.subr.bf16.mxu0 0
    %1390 = vmatpush2.bf16.msra.mxu0 0
    %1391 = vmatprep.subr.bf16.mxu0 0
    %1392 = vmatpush2.bf16.msra.mxu0 0
    %1393 = vmatprep.subr.bf16.mxu0 0
    %1394 = vmatpush2.bf16.msra.mxu0 0
    %1395 = vmatprep.subr.bf16.mxu0 0
    %1396 = vmatpush2.bf16.msra.mxu0 0
    %1397 = vmatprep.subr.bf16.mxu0 0
    %1398 = vmatpush2.bf16.msra.mxu0 0
    %1399 = vmatprep.subr.bf16.mxu0 0
    %1400 = vmatpush2.bf16.msra.mxu0 0
    %1401 = vmatprep.subr.bf16.mxu0 0
    %1402 = vmatpush2.bf16.msra.mxu0 0
    %1403 = vmatprep.mubr.bf16.mxu0 0
    %1404 = vmatmul.mubr.bf16.gmra.mxu0 %v1366
    %v1405 = vpop.f32.mrf.mxu0
    %v1406 = vadd.f32 0.0, %v1405
    %v1407 = vpop.f32.mrf.mxu0
    %v1408 = vpop.f32.mrf.mxu0
    %v1409 = vpop.f32.mrf.mxu0
    %1410 = vdwg.mxu0
    %v1411 = vcombine.high %v1268, 0.0
    %v1413 = vunpack.c.l.s4 1983009808
    %v1414 = vunpack.c.0.s8 %v1413
    %v1415 = vlaneseq
    %v1416 = vshrl.u32 %v1415, 7
    %v1417 = vsub.s32 %v1414, %v1416
    %v1418 = vrot.slane %v1268, %v1417
    %v1420 = vunpack.c.l.s4 1983009808
    %v1421 = vunpack.c.0.s8 %v1420
    %v1422 = vlaneseq
    %v1423 = vshrl.u32 %v1422, 7
    %v1424 = vsub.s32 %v1421, %v1423
    %v1425 = vrot.slane %v1411, %v1424
    %v1426 = vcombine.high %v1360, 0.0
    %v1428 = vunpack.c.l.s4 1983009808
    %v1429 = vunpack.c.0.s8 %v1428
    %v1430 = vlaneseq
    %v1431 = vshrl.u32 %v1430, 7
    %v1432 = vsub.s32 %v1429, %v1431
    %v1433 = vrot.slane %v1360, %v1432
    %v1435 = vunpack.c.l.s4 1983009808
    %v1436 = vunpack.c.0.s8 %v1435
    %v1437 = vlaneseq
    %v1438 = vshrl.u32 %v1437, 7
    %v1439 = vsub.s32 %v1436, %v1438
    %v1440 = vrot.slane %v1426, %v1439
    %v1441 = vcombine.low %v1418, %v1433
    %v1442 = vcombine.high %v1418, %v1433
    %v1444 = vunpack.c.l.s4 1934713408
    %v1445 = vunpack.c.0.s8 %v1444
    %v1446 = vlaneseq
    %v1447 = vshrl.u32 %v1446, 7
    %v1448 = vsub.s32 %v1445, %v1447
    %v1449 = vrot.slane %v1441, %v1448
    %v1451 = vunpack.c.l.s4 1934713408
    %v1452 = vunpack.c.0.s8 %v1451
    %v1453 = vlaneseq
    %v1454 = vshrl.u32 %v1453, 7
    %v1455 = vsub.s32 %v1452, %v1454
    %v1456 = vrot.slane %v1442, %v1455
    %v1457 = vcombine.low %v1425, %v1440
    %v1458 = vcombine.high %v1425, %v1440
    %v1460 = vunpack.c.l.s4 1934713408
    %v1461 = vunpack.c.0.s8 %v1460
    %v1462 = vlaneseq
    %v1463 = vshrl.u32 %v1462, 7
    %v1464 = vsub.s32 %v1461, %v1463
    %v1465 = vrot.slane %v1457, %v1464
    %v1467 = vunpack.c.l.s4 1934713408
    %v1468 = vunpack.c.0.s8 %v1467
    %v1469 = vlaneseq
    %v1470 = vshrl.u32 %v1469, 7
    %v1471 = vsub.s32 %v1468, %v1470
    %v1472 = vrot.slane %v1458, %v1471
    %v1473 = vcombine.high %v1449, 0.0
    %v1474 = vcombine.high %v1456, 0.0
    %v1475 = vcombine.high %v1465, 0.0
    %v1476 = vcombine.high %v1472, 0.0
    %v1477 = vcombine.high %v1314, 0.0
    %v1479 = vunpack.c.l.s4 1983009808
    %v1480 = vunpack.c.0.s8 %v1479
    %v1481 = vlaneseq
    %v1482 = vshrl.u32 %v1481, 7
    %v1483 = vsub.s32 %v1480, %v1482
    %v1484 = vrot.slane %v1314, %v1483
    %v1486 = vunpack.c.l.s4 1983009808
    %v1487 = vunpack.c.0.s8 %v1486
    %v1488 = vlaneseq
    %v1489 = vshrl.u32 %v1488, 7
    %v1490 = vsub.s32 %v1487, %v1489
    %v1491 = vrot.slane %v1477, %v1490
    %v1492 = vcombine.high %v1406, 0.0
    %v1494 = vunpack.c.l.s4 1983009808
    %v1495 = vunpack.c.0.s8 %v1494
    %v1496 = vlaneseq
    %v1497 = vshrl.u32 %v1496, 7
    %v1498 = vsub.s32 %v1495, %v1497
    %v1499 = vrot.slane %v1406, %v1498
    %v1501 = vunpack.c.l.s4 1983009808
    %v1502 = vunpack.c.0.s8 %v1501
    %v1503 = vlaneseq
    %v1504 = vshrl.u32 %v1503, 7
    %v1505 = vsub.s32 %v1502, %v1504
    %v1506 = vrot.slane %v1492, %v1505
    %v1507 = vcombine.low %v1484, %v1499
    %v1508 = vcombine.high %v1484, %v1499
    %v1510 = vunpack.c.l.s4 1934713408
    %v1511 = vunpack.c.0.s8 %v1510
    %v1512 = vlaneseq
    %v1513 = vshrl.u32 %v1512, 7
    %v1514 = vsub.s32 %v1511, %v1513
    %v1515 = vrot.slane %v1507, %v1514
    %v1517 = vunpack.c.l.s4 1934713408
    %v1518 = vunpack.c.0.s8 %v1517
    %v1519 = vlaneseq
    %v1520 = vshrl.u32 %v1519, 7
    %v1521 = vsub.s32 %v1518, %v1520
    %v1522 = vrot.slane %v1508, %v1521
    %v1523 = vcombine.low %v1491, %v1506
    %v1524 = vcombine.high %v1491, %v1506
    %v1526 = vunpack.c.l.s4 1934713408
    %v1527 = vunpack.c.0.s8 %v1526
    %v1528 = vlaneseq
    %v1529 = vshrl.u32 %v1528, 7
    %v1530 = vsub.s32 %v1527, %v1529
    %v1531 = vrot.slane %v1523, %v1530
    %v1533 = vunpack.c.l.s4 1934713408
    %v1534 = vunpack.c.0.s8 %v1533
    %v1535 = vlaneseq
    %v1536 = vshrl.u32 %v1535, 7
    %v1537 = vsub.s32 %v1534, %v1536
    %v1538 = vrot.slane %v1524, %v1537
    %v1539 = vcombine.high %v1515, 0.0
    %v1540 = vcombine.high %v1522, 0.0
    %v1541 = vcombine.high %v1531, 0.0
    %v1542 = vcombine.high %v1538, 0.0
    %v1543 = vcombine.low %v1449, %v1456
    %v1545 = vunpack.c.l.s4 1983009808
    %v1546 = vunpack.c.0.s8 %v1545
    %v1547 = vlaneseq
    %v1548 = vshrl.u32 %v1547, 7
    %v1549 = vsub.s32 %v1546, %v1548
    %v1550 = vrot.slane %v1543, %v1549
    %v1551 = vcombine.low %v1473, %v1474
    %v1553 = vunpack.c.l.s4 1983009808
    %v1554 = vunpack.c.0.s8 %v1553
    %v1555 = vlaneseq
    %v1556 = vshrl.u32 %v1555, 7
    %v1557 = vsub.s32 %v1554, %v1556
    %v1558 = vrot.slane %v1551, %v1557
    %v1559 = vcombine.low %v1465, %v1472
    %v1561 = vunpack.c.l.s4 1983009808
    %v1562 = vunpack.c.0.s8 %v1561
    %v1563 = vlaneseq
    %v1564 = vshrl.u32 %v1563, 7
    %v1565 = vsub.s32 %v1562, %v1564
    %v1566 = vrot.slane %v1559, %v1565
    %v1567 = vcombine.low %v1475, %v1476
    %v1569 = vunpack.c.l.s4 1983009808
    %v1570 = vunpack.c.0.s8 %v1569
    %v1571 = vlaneseq
    %v1572 = vshrl.u32 %v1571, 7
    %v1573 = vsub.s32 %v1570, %v1572
    %v1574 = vrot.slane %v1567, %v1573
    %v1575 = vcombine.low %v1550, %v1558
    %v1577 = vunpack.c.l.s4 1934713408
    %v1578 = vunpack.c.0.s8 %v1577
    %v1579 = vlaneseq
    %v1580 = vshrl.u32 %v1579, 7
    %v1581 = vsub.s32 %v1578, %v1580
    %v1582 = vrot.slane %v1575, %v1581
    %v1583 = vcombine.low %v1566, %v1574
    %v1585 = vunpack.c.l.s4 1934713408
    %v1586 = vunpack.c.0.s8 %v1585
    %v1587 = vlaneseq
    %v1588 = vshrl.u32 %v1587, 7
    %v1589 = vsub.s32 %v1586, %v1588
    %v1590 = vrot.slane %v1583, %v1589
    %v1591 = vcombine.low %v1582, %v1590
    %v1592 = vcombine.high %v1582, %v1590
    %v1593 = vcombine.low %v1515, %v1522
    %v1595 = vunpack.c.l.s4 1983009808
    %v1596 = vunpack.c.0.s8 %v1595
    %v1597 = vlaneseq
    %v1598 = vshrl.u32 %v1597, 7
    %v1599 = vsub.s32 %v1596, %v1598
    %v1600 = vrot.slane %v1593, %v1599
    %v1601 = vcombine.low %v1539, %v1540
    %v1603 = vunpack.c.l.s4 1983009808
    %v1604 = vunpack.c.0.s8 %v1603
    %v1605 = vlaneseq
    %v1606 = vshrl.u32 %v1605, 7
    %v1607 = vsub.s32 %v1604, %v1606
    %v1608 = vrot.slane %v1601, %v1607
    %v1609 = vcombine.low %v1531, %v1538
    %v1611 = vunpack.c.l.s4 1983009808
    %v1612 = vunpack.c.0.s8 %v1611
    %v1613 = vlaneseq
    %v1614 = vshrl.u32 %v1613, 7
    %v1615 = vsub.s32 %v1612, %v1614
    %v1616 = vrot.slane %v1609, %v1615
    %v1617 = vcombine.low %v1541, %v1542
    %v1619 = vunpack.c.l.s4 1983009808
    %v1620 = vunpack.c.0.s8 %v1619
    %v1621 = vlaneseq
    %v1622 = vshrl.u32 %v1621, 7
    %v1623 = vsub.s32 %v1620, %v1622
    %v1624 = vrot.slane %v1617, %v1623
    %v1625 = vcombine.low %v1600, %v1608
    %v1627 = vunpack.c.l.s4 1934713408
    %v1628 = vunpack.c.0.s8 %v1627
    %v1629 = vlaneseq
    %v1630 = vshrl.u32 %v1629, 7
    %v1631 = vsub.s32 %v1628, %v1630
    %v1632 = vrot.slane %v1625, %v1631
    %v1633 = vcombine.low %v1616, %v1624
    %v1635 = vunpack.c.l.s4 1934713408
    %v1636 = vunpack.c.0.s8 %v1635
    %v1637 = vlaneseq
    %v1638 = vshrl.u32 %v1637, 7
    %v1639 = vsub.s32 %v1636, %v1638
    %v1640 = vrot.slane %v1633, %v1639
    %v1641 = vcombine.low %v1632, %v1640
    %v1642 = vcombine.high %v1632, %v1640
    %1645 = vrot.lane.b32.xlu0 %v1592, 16
    %v1646 = vpop.permute.xlu0 %1645
    %1647 = vrot.lane.b32.xlu0 %v1642, 16
    %v1648 = vpop.permute.xlu0 %1647
    %v1651 = vsel %vm1026, %v1591, %v1646
    %v1652 = vsel %vm1026, %v1641, %v1648
    %v1653 = vpack.c.bf16 %v1652, %v1651
    %v1654 = vld [vmem:[#allocation5] sm:$0xf]
    %v1655 = vld [vmem:[#allocation5 + $0x4] sm:$0xf]
    %v1656 = vld [vmem:[#allocation5 + $0x8] sm:$0xf]
    %v1657 = vld [vmem:[#allocation5 + $0xc] sm:$0xf]
    %v1658 = vld [vmem:[%s10] sm:$0x1]
    %v1660 = vlaneseq
    %v1661 = vshrl.u32 %v1660, 7
    %v1662 = vsub.s32 0, %v1661
    %v1663 = vrot.slane %v1658, %v1662
    %v1669 = vunpack.c.l.b16 %v1654
    %v1670 = vunpack.c.l.b16 %v1655
    %v1671 = vunpack.c.l.b16 %v1656
    %v1672 = vunpack.c.l.b16 %v1657
    %v1673 = vpack.c.b16 %v1670, %v1669
    %v1674 = vpack.c.b16 %v1672, %v1671
    %v1678 = vsel %vm103, %v1653, 0
    %1680 = vmatprep.subr.bf16.mxu0 0
    %1681 = vmatpush1.bf16.msra.mxu0 0
    %1682 = vmatprep.subr.bf16.mxu0 0
    %1683 = vmatpush1.bf16.msra.mxu0 0
    %1684 = vmatprep.subr.bf16.mxu0 0
    %1685 = vmatpush1.bf16.msra.mxu0 0
    %1686 = vmatprep.subr.bf16.mxu0 0
    %1687 = vmatpush1.bf16.msra.mxu0 0
    %1688 = vmatprep.subr.bf16.mxu0 0
    %1689 = vmatpush1.bf16.msra.mxu0 0
    %1690 = vmatprep.subr.bf16.mxu0 0
    %1691 = vmatpush1.bf16.msra.mxu0 0
    %1692 = vmatprep.subr.bf16.mxu0 0
    %1693 = vmatpush1.bf16.msra.mxu0 %v1674
    %1694 = vmatprep.subr.bf16.mxu0 0
    %1695 = vmatpush1.bf16.msra.mxu0 %v1673
    %1696 = vmatprep.subr.bf16.mxu0 0
    %1697 = vmatpush2.bf16.msra.mxu0 0
    %1698 = vmatprep.subr.bf16.mxu0 0
    %1699 = vmatpush2.bf16.msra.mxu0 0
    %1700 = vmatprep.subr.bf16.mxu0 0
    %1701 = vmatpush2.bf16.msra.mxu0 0
    %1702 = vmatprep.subr.bf16.mxu0 0
    %1703 = vmatpush2.bf16.msra.mxu0 0
    %1704 = vmatprep.subr.bf16.mxu0 0
    %1705 = vmatpush2.bf16.msra.mxu0 0
    %1706 = vmatprep.subr.bf16.mxu0 0
    %1707 = vmatpush2.bf16.msra.mxu0 0
    %1708 = vmatprep.subr.bf16.mxu0 0
    %1709 = vmatpush2.bf16.msra.mxu0 0
    %1710 = vmatprep.subr.bf16.mxu0 0
    %1711 = vmatpush2.bf16.msra.mxu0 0
    %1712 = vmatprep.mubr.bf16.mxu0 0
    %1713 = vmatmul.mubr.bf16.gmra.mxu0 %v1678
    %v1714 = vpop.f32.mrf.mxu0
    %v1715 = vadd.f32 %v1663, %v1714
    %v1716 = vpop.f32.mrf.mxu0
    %v1717 = vpop.f32.mrf.mxu0
    %v1718 = vadd.f32 %v1663, %v1717
    %v1719 = vpop.f32.mrf.mxu0
    %1720 = vdwg.mxu0
    %v1721 = vadd.f32 %v99, %v1715
    %v1722 = vadd.f32 %v100, %v1718
    %v1723 = vld [vmem:[%s11] sm:$0x1]
    %v1724 = vld [vmem:[%s12] sm:$0x1]
    %v1725 = vsel %vm103, %v1721, 0.0
    %1726 = vadd.xlane.f32.xlu0 %v1725
    %v1727 = vpop.xlane.xlu0 %1726
    %v1728 = vsel %vm103, %v1722, 0.0
    %1729 = vadd.xlane.f32.xlu0 %v1728
    %v1730 = vpop.xlane.xlu0 %1729
    %v1731 = vmul.f32 %v1727, %v110
    %v1732 = vmul.f32 %v1730, %v110
    %v1733 = vsub.f32 %v1721, %v1731
    %v1734 = vsub.f32 %v1722, %v1732
    %v1735 = vmul.f32 %v1733, %v1733
    %v1736 = vmul.f32 %v1734, %v1734
    %v1737 = vsel %vm103, %v1735, 0.0
    %1738 = vadd.xlane.f32.xlu0 %v1737
    %v1739 = vpop.xlane.xlu0 %1738
    %v1740 = vsel %vm103, %v1736, 0.0
    %1741 = vadd.xlane.f32.xlu0 %v1740
    %v1742 = vpop.xlane.xlu0 %1741
    %v1743 = vmul.f32 %v1739, %v110
    %v1744 = vmul.f32 %v1742, %v110
    %v1745 = vadd.f32 %v1743, 1e-05
    %v1746 = vadd.f32 %v1744, 1e-05
    %v1747 = vrsqrt.pop %v1745
    %v1748 = vrsqrt.pop %v1746
    %v1749 = vmul.f32 %v1733, %v1747
    %v1750 = vmul.f32 %v1734, %v1748
    %v1752 = vlaneseq
    %v1753 = vshrl.u32 %v1752, 7
    %v1754 = vsub.s32 0, %v1753
    %v1755 = vrot.slane %v1723, %v1754
    %v1757 = vmul.f32 %v1749, %v1755
    %v1758 = vmul.f32 %v1750, %v1755
    %v1760 = vlaneseq
    %v1761 = vshrl.u32 %v1760, 7
    %v1762 = vsub.s32 0, %v1761
    %v1763 = vrot.slane %v1724, %v1762
    %v1765 = vadd.f32 %v1757, %v1763
    %v1766 = vadd.f32 %v1758, %v1763
    %v1767 = vpack.c.bf16 %v1766, %v1765
    %v1768 = vld [vmem:[#allocation7] sm:$0xf]
    %v1769 = vld [vmem:[#allocation7 + $0x4] sm:$0xf]
    %v1770 = vld [vmem:[#allocation7 + $0x8] sm:$0xf]
    %v1771 = vld [vmem:[#allocation7 + $0xc] sm:$0xf]
    %v1772 = vld [vmem:[%s14] sm:$0x1]
    %v1774 = vlaneseq
    %v1775 = vshrl.u32 %v1774, 7
    %v1776 = vsub.s32 0, %v1775
    %v1777 = vrot.slane %v1772, %v1776
    %v1783 = vunpack.c.l.b16 %v1768
    %v1784 = vunpack.c.l.b16 %v1769
    %v1785 = vunpack.c.l.b16 %v1770
    %v1786 = vunpack.c.l.b16 %v1771
    %v1787 = vpack.c.b16 %v1784, %v1783
    %v1788 = vpack.c.b16 %v1786, %v1785
    %v1792 = vsel %vm103, %v1767, 0
    %1794 = vmatprep.subr.bf16.mxu0 0
    %1795 = vmatpush1.bf16.msra.mxu0 0
    %1796 = vmatprep.subr.bf16.mxu0 0
    %1797 = vmatpush1.bf16.msra.mxu0 0
    %1798 = vmatprep.subr.bf16.mxu0 0
    %1799 = vmatpush1.bf16.msra.mxu0 0
    %1800 = vmatprep.subr.bf16.mxu0 0
    %1801 = vmatpush1.bf16.msra.mxu0 0
    %1802 = vmatprep.subr.bf16.mxu0 0
    %1803 = vmatpush1.bf16.msra.mxu0 0
    %1804 = vmatprep.subr.bf16.mxu0 0
    %1805 = vmatpush1.bf16.msra.mxu0 0
    %1806 = vmatprep.subr.bf16.mxu0 0
    %1807 = vmatpush1.bf16.msra.mxu0 %v1788
    %1808 = vmatprep.subr.bf16.mxu0 0
    %1809 = vmatpush1.bf16.msra.mxu0 %v1787
    %1810 = vmatprep.subr.bf16.mxu0 0
    %1811 = vmatpush2.bf16.msra.mxu0 0
    %1812 = vmatprep.subr.bf16.mxu0 0
    %1813 = vmatpush2.bf16.msra.mxu0 0
    %1814 = vmatprep.subr.bf16.mxu0 0
    %1815 = vmatpush2.bf16.msra.mxu0 0
    %1816 = vmatprep.subr.bf16.mxu0 0
    %1817 = vmatpush2.bf16.msra.mxu0 0
    %1818 = vmatprep.subr.bf16.mxu0 0
    %1819 = vmatpush2.bf16.msra.mxu0 0
    %1820 = vmatprep.subr.bf16.mxu0 0
    %1821 = vmatpush2.bf16.msra.mxu0 0
    %1822 = vmatprep.subr.bf16.mxu0 0
    %1823 = vmatpush2.bf16.msra.mxu0 0
    %1824 = vmatprep.subr.bf16.mxu0 0
    %1825 = vmatpush2.bf16.msra.mxu0 0
    %1826 = vmatprep.mubr.bf16.mxu0 0
    %1827 = vmatmul.mubr.bf16.gmra.mxu0 %v1792
    %v1828 = vpop.f32.mrf.mxu0
    %v1829 = vadd.f32 %v1777, %v1828
    %v1830 = vpop.f32.mrf.mxu0
    %v1831 = vpop.f32.mrf.mxu0
    %v1832 = vadd.f32 %v1777, %v1831
    %v1833 = vpop.f32.mrf.mxu0
    %1834 = vdwg.mxu0
    %v1835 = vmax.f32 %v1829, 0.0
    %v1836 = vmax.f32 %v1832, 0.0
    %v1837 = vpack.c.bf16 %v1836, %v1835
    %v1838 = vld [vmem:[%s15] sm:$0xf]
    %v1839 = vld [vmem:[%s15 + $0x4] sm:$0xf]
    %v1840 = vld [vmem:[%s15 + $0x8] sm:$0xf]
    %v1841 = vld [vmem:[%s15 + $0xc] sm:$0xf]
    %v1842 = vld [vmem:[%s15 + $0x10] sm:$0xf]
    %v1843 = vld [vmem:[%s15 + $0x14] sm:$0xf]
    %v1844 = vld [vmem:[%s15 + $0x18] sm:$0xf]
    %v1845 = vld [vmem:[%s15 + $0x1c] sm:$0xf]
    %v1846 = vld [vmem:[%s16] sm:$0x1]
    %v1848 = vlaneseq
    %v1849 = vshrl.u32 %v1848, 7
    %v1850 = vsub.s32 0, %v1849
    %v1851 = vrot.slane %v1846, %v1850
    %v1861 = vunpack.c.l.b16 %v1838
    %v1862 = vunpack.c.l.b16 %v1839
    %v1863 = vunpack.c.l.b16 %v1840
    %v1864 = vunpack.c.l.b16 %v1841
    %v1865 = vunpack.c.l.b16 %v1842
    %v1866 = vunpack.c.l.b16 %v1843
    %v1867 = vunpack.c.l.b16 %v1844
    %v1868 = vunpack.c.l.b16 %v1845
    %v1869 = vpack.c.b16 %v1862, %v1861
    %v1870 = vpack.c.b16 %v1864, %v1863
    %v1871 = vpack.c.b16 %v1866, %v1865
    %v1872 = vpack.c.b16 %v1868, %v1867
    %vm1877 = vcmask 523264
    %v1879 = vsel %vm1877, %v1837, 0
    %1881 = vmatprep.subr.bf16.mxu0 0
    %1882 = vmatpush1.bf16.msra.mxu0 0
    %1883 = vmatprep.subr.bf16.mxu0 0
    %1884 = vmatpush1.bf16.msra.mxu0 0
    %1885 = vmatprep.subr.bf16.mxu0 0
    %1886 = vmatpush1.bf16.msra.mxu0 0
    %1887 = vmatprep.subr.bf16.mxu0 0
    %1888 = vmatpush1.bf16.msra.mxu0 0
    %1889 = vmatprep.subr.bf16.mxu0 0
    %1890 = vmatpush1.bf16.msra.mxu0 %v1872
    %1891 = vmatprep.subr.bf16.mxu0 0
    %1892 = vmatpush1.bf16.msra.mxu0 %v1871
    %1893 = vmatprep.subr.bf16.mxu0 0
    %1894 = vmatpush1.bf16.msra.mxu0 %v1870
    %1895 = vmatprep.subr.bf16.mxu0 0
    %1896 = vmatpush1.bf16.msra.mxu0 %v1869
    %1897 = vmatprep.subr.bf16.mxu0 0
    %1898 = vmatpush2.bf16.msra.mxu0 0
    %1899 = vmatprep.subr.bf16.mxu0 0
    %1900 = vmatpush2.bf16.msra.mxu0 0
    %1901 = vmatprep.subr.bf16.mxu0 0
    %1902 = vmatpush2.bf16.msra.mxu0 0
    %1903 = vmatprep.subr.bf16.mxu0 0
    %1904 = vmatpush2.bf16.msra.mxu0 0
    %1905 = vmatprep.subr.bf16.mxu0 0
    %1906 = vmatpush2.bf16.msra.mxu0 0
    %1907 = vmatprep.subr.bf16.mxu0 0
    %1908 = vmatpush2.bf16.msra.mxu0 0
    %1909 = vmatprep.subr.bf16.mxu0 0
    %1910 = vmatpush2.bf16.msra.mxu0 0
    %1911 = vmatprep.subr.bf16.mxu0 0
    %1912 = vmatpush2.bf16.msra.mxu0 0
    %1913 = vmatprep.mubr.bf16.mxu0 0
    %1914 = vmatmul.mubr.bf16.gmra.mxu0 %v1879
    %v1915 = vpop.f32.mrf.mxu0
    %v1916 = vadd.f32 %v1851, %v1915
    %v1917 = vpop.f32.mrf.mxu0
    %v1918 = vpop.f32.mrf.mxu0
    %v1919 = vadd.f32 %v1851, %v1918
    %v1920 = vpop.f32.mrf.mxu0
    %1921 = vdwg.mxu0
    %v1922 = vadd.f32 %v1721, %v1916
    %v1923 = vadd.f32 %v1722, %v1919
    %1924 = vst.msk [vmem:[#allocation8] sm:$0xff] %vm103, %v1922
    %1925 = vst.msk [vmem:[#allocation8 + $0x8] sm:$0xff] %vm103, %v1923
    // Predicated region
    $region82: #{tpu_custom_call.1} parent=1 // pred_check
      _
    $region83: #{tpu_custom_call.1} parent=1 // pred_check_branch
      %1927 = sbr.rel (0) target = $region85
    $region84: #{tpu_custom_call.1} parent=1 // pred_region
      %s1929 = ssub.s32 256, 256
      %1930 = vsyncadd [#allocation4], %s1929
      %s1931 = sshll.u32 [#allocation8], 4
      %s1932 = int_to_ptr.vmem [resolvable:$true] %s1931
      %1937 = dma.vmem_to_hbm [thread:$0]  %s1932, 256, %s17, [#allocation4], 128, 128, 8
    $region85: #{tpu_custom_call.1} parent=1 // pred_fallthru
      _
    // Predicated region
    $region86: #{tpu_custom_call.1} parent=1 // pred_check
      _
    $region87: #{tpu_custom_call.1} parent=1 // pred_check_branch
      %1939 = sbr.rel (0) target = $region89
    $region88: #{tpu_custom_call.1} parent=1 // pred_region
      %1940 = dma.done [#allocation4], 256
    $region89: #{tpu_custom_call.1} parent=1 // pred_fallthru
      _
    %1941 = vsyncpa [#allocation3], 1
    %1942 = vsyncpa [#allocation6], 1
    %1943 = vsyncpa [#allocation4], 1

</llo_original>
